<compile_context>
chip_gen: v7x
topology: tpu7x:2x2x1
jax: 0.10.0
libtpu: 0.0.40
codegen_flags: <defaults>
</compile_context>

<pallas_src>
import functools

import jax
import jax.numpy as jnp
from jax.experimental import pallas as pl
from jax.experimental.pallas import tpu as pltpu


IN_DIM = 28 * 28          # 784
IN_PAD = 896              # 7 * 128 lane-aligned K for layer 1
HID = 512
OUT_DIM = 10
OUT_PAD = 128             # lane-dense padded output width


def _round_up(x, m):
    return ((x + m - 1) // m) * m


def mlp_kernel(x_ref, w1_ref, b1_ref, w2_ref, b2_ref, w3_ref, b3_ref, o_ref):
    # Hot path: cast-on-VPU then 3 bf16 MXU matmuls with fp32 accumulation,
    # bias add + ReLU, all in VMEM.
    x = x_ref[...].astype(jnp.bfloat16)                                 # (TB, 896)
    h1 = jnp.dot(x, w1_ref[...], preferred_element_type=jnp.float32) + b1_ref[...]
    h1 = jnp.maximum(h1, 0.0).astype(jnp.bfloat16)                      # (TB, 512)
    h2 = jnp.dot(h1, w2_ref[...], preferred_element_type=jnp.float32) + b2_ref[...]
    h2 = jnp.maximum(h2, 0.0).astype(jnp.bfloat16)                      # (TB, 512)
    logits = jnp.dot(h2, w3_ref[...], preferred_element_type=jnp.float32) + b3_ref[...]
    o_ref[...] = logits.astype(o_ref.dtype)                             # (TB, 128)


def prepare_params(params):
    """One-time weight preparation (call once, reuse across forward calls).

    bf16 weights, fp32 biases; w1 K-padded 784->896, w3/b3 N-padded 10->128.
    Zero padding is exact: padded x columns hit zero w1 rows; padded logit
    columns are sliced off in the wrapper.
    """
    w1, b1, w2, b2, w3, b3 = params
    w1_c = jnp.pad(w1, ((0, IN_PAD - IN_DIM), (0, 0))).astype(jnp.bfloat16)
    w2_c = w2.astype(jnp.bfloat16)
    w3_c = jnp.pad(w3, ((0, 0), (0, OUT_PAD - OUT_DIM))).astype(jnp.bfloat16)
    b3_p = jnp.pad(b3, ((0, 0), (0, OUT_PAD - OUT_DIM)))
    return w1_c, b1, w2_c, b2, w3_c, b3_p


@functools.partial(jax.jit, static_argnames=("block_b",))
def neural_network_forward(x, prepared_params, *, block_b=1024):
    """x: (B, 28, 28) float32 -> logits (B, 10) float32.

    `prepared_params` must come from prepare_params() (bf16, padded) so no
    per-call weight conversion traffic is generated.
    """
    w1_c, b1, w2_c, b2, w3_c, b3_p = prepared_params
    B = x.shape[0]
    x_flat = jnp.reshape(x, (B, IN_DIM))                 # Flatten (glue in JAX)

    # Batch tiling: multiples of 16 rows (bf16 sublane packing).  For moderate
    # batches split into >=2 tiles so both v7x TensorCores get work; cap at
    # block_b and pad the batch so every grid block is full-size.
    b16 = _round_up(B, 16)
    if b16 >= 32:
        tb = min(block_b, _round_up((b16 + 1) // 2, 16))
    else:
        tb = b16
    b_pad = _round_up(B, tb)
    grid_b = b_pad // tb

    # fp32 input, zero-padded on batch and on K (784 -> 896); the bf16 cast
    # happens inside the kernel.
    x_p = jnp.pad(x_flat, ((0, b_pad - B), (0, IN_PAD - IN_DIM)))

    flops = 2 * b_pad * (IN_PAD * HID + HID * HID + HID * OUT_PAD)
    bytes_accessed = (
        x_p.size * 4                                     # fp32 input
        + (w1_c.size + w2_c.size + w3_c.size) * 2        # bf16 weights (DMA'd once)
        + (b1.size + b2.size + b3_p.size) * 4            # fp32 biases
        + b_pad * OUT_PAD * 4                            # fp32 output
    )

    out = pl.pallas_call(
        mlp_kernel,
        out_shape=jax.ShapeDtypeStruct((b_pad, OUT_PAD), jnp.float32),
        grid=(grid_b,),
        in_specs=[
            pl.BlockSpec((tb, IN_PAD), lambda i: (i, 0)),       # x tile (pipelined)
            pl.BlockSpec((IN_PAD, HID), lambda i: (0, 0)),      # w1 resident in VMEM
            pl.BlockSpec((1, HID), lambda i: (0, 0)),           # b1
            pl.BlockSpec((HID, HID), lambda i: (0, 0)),         # w2
            pl.BlockSpec((1, HID), lambda i: (0, 0)),           # b2
            pl.BlockSpec((HID, OUT_PAD), lambda i: (0, 0)),     # w3 (padded)
            pl.BlockSpec((1, OUT_PAD), lambda i: (0, 0)),       # b3 (padded)
        ],
        out_specs=pl.BlockSpec((tb, OUT_PAD), lambda i: (i, 0)),
        compiler_params=pltpu.CompilerParams(
            dimension_semantics=("parallel",),                  # megacore on v7x
            vmem_limit_bytes=48 * 1024 * 1024,                  # TB=1024 fits on v5e too
        ),
        cost_estimate=pl.CostEstimate(
            flops=flops, transcendentals=0, bytes_accessed=bytes_accessed
        ),
    )(x_p, w1_c, b1, w2_c, b2, w3_c, b3_p)

    return out[:B, :OUT_DIM]


def init_params(key):
    """Deterministic init matching torch.nn.Linear default (U(-1/sqrt(fan_in), +))."""
    def linear(key, fan_in, fan_out):
        kw, kb = jax.random.split(key)
        bound = 1.0 / jnp.sqrt(fan_in)
        w = jax.random.uniform(kw, (fan_in, fan_out), jnp.float32, -bound, bound)
        b = jax.random.uniform(kb, (1, fan_out), jnp.float32, -bound, bound)
        return w, b

    k1, k2, k3 = jax.random.split(key, 3)
    w1, b1 = linear(k1, IN_DIM, HID)
    w2, b2 = linear(k2, HID, HID)
    w3, b3 = linear(k3, HID, OUT_DIM)
    return w1, b1, w2, b2, w3, b3


def reference_forward(x, params):
    w1, b1, w2, b2, w3, b3 = params
    h = jnp.reshape(x, (x.shape[0], IN_DIM))
    h = jnp.maximum(h @ w1 + b1, 0.0)
    h = jnp.maximum(h @ w2 + b2, 0.0)
    return h @ w3 + b3


if __name__ == "__main__":
    key = jax.random.PRNGKey(0)
    k_x, k_p = jax.random.split(key)

    B = 2
    x = jax.random.uniform(k_x, (B, 28, 28), jnp.float32)   # like torch.rand(1, 28, 28)
    params = init_params(k_p)

    # One-time weight preparation (bf16 cast + padding) outside the hot path.
    prepped = jax.block_until_ready(prepare_params(params))

    logits = neural_network_forward(x, prepped)
    logits = jax.block_until_ready(logits)

    ref = reference_forward(x, params)                       # fp32 reference
    assert logits.shape == (B, OUT_DIM)
    # bf16 weights/activations -> compare at bf16-level tolerance against fp32 ref.
    assert jnp.allclose(logits, ref, atol=2e-2, rtol=2e-2)

    print("KERNEL_OK")
</pallas_src>

<mosaic_0001>
module attributes {stable_mosaic.version = 11 : i64} {
  func.func @mlp_kernel(%arg0: i32, %arg1: memref<16x896xf32, #tpu.memory_space<vmem>>, %arg2: memref<896x512xbf16, #tpu.memory_space<vmem>>, %arg3: memref<1x512xf32, #tpu.memory_space<vmem>>, %arg4: memref<512x512xbf16, #tpu.memory_space<vmem>>, %arg5: memref<1x512xf32, #tpu.memory_space<vmem>>, %arg6: memref<512x128xbf16, #tpu.memory_space<vmem>>, %arg7: memref<1x128xf32, #tpu.memory_space<vmem>>, %arg8: memref<16x128xf32, #tpu.memory_space<vmem>>) attributes {dimension_semantics = [#tpu.dimension_semantics<parallel>], iteration_bounds = array<i64: 1>, scalar_prefetch = 0 : i64, scratch_operands = 0 : i64, tpu.core_type = #tpu.core_type<tc>, window_params = [{transform_indices = @transform_0, window_bounds = array<i64: 16, 896>}, {pipeline_mode = #tpu.pipeline_mode<synchronous>, transform_indices = @transform_1, window_bounds = array<i64: 896, 512>}, {pipeline_mode = #tpu.pipeline_mode<synchronous>, transform_indices = @transform_2, window_bounds = array<i64: 1, 512>}, {pipeline_mode = #tpu.pipeline_mode<synchronous>, transform_indices = @transform_3, window_bounds = array<i64: 512, 512>}, {pipeline_mode = #tpu.pipeline_mode<synchronous>, transform_indices = @transform_4, window_bounds = array<i64: 1, 512>}, {pipeline_mode = #tpu.pipeline_mode<synchronous>, transform_indices = @transform_5, window_bounds = array<i64: 512, 128>}, {pipeline_mode = #tpu.pipeline_mode<synchronous>, transform_indices = @transform_6, window_bounds = array<i64: 1, 128>}, {transform_indices = @transform_7, window_bounds = array<i64: 16, 128>}]} {
    %c0 = arith.constant 0 : index
    %c0_0 = arith.constant 0 : index
    %0 = vector.load %arg1[%c0, %c0_0] : memref<16x896xf32, #tpu.memory_space<vmem>>, vector<16x896xf32>
    %1 = arith.truncf %0 : vector<16x896xf32> to vector<16x896xbf16>
    %c0_1 = arith.constant 0 : index
    %c0_2 = arith.constant 0 : index
    %2 = vector.load %arg2[%c0_1, %c0_2] : memref<896x512xbf16, #tpu.memory_space<vmem>>, vector<896x512xbf16>
    %cst = arith.constant dense<0.000000e+00> : vector<16x512xf32>
    %3 = tpu.matmul %1, %2, %cst {dimension_numbers = #tpu.dot_dimension_numbers<[1], [0], [0], [1], [0, 0, 1, 1], [], []>} : vector<16x896xbf16>, vector<896x512xbf16>, vector<16x512xf32> -> vector<16x512xf32>
    %c0_3 = arith.constant 0 : index
    %c0_4 = arith.constant 0 : index
    %4 = vector.load %arg3[%c0_3, %c0_4] : memref<1x512xf32, #tpu.memory_space<vmem>>, vector<1x512xf32>
    %5 = vector.broadcast %4 : vector<1x512xf32> to vector<16x512xf32>
    %6 = arith.addf %3, %5 : vector<16x512xf32>
    %cst_5 = arith.constant 0.000000e+00 : f32
    %7 = vector.broadcast %cst_5 : f32 to vector<16x512xf32>
    %8 = arith.maximumf %6, %7 : vector<16x512xf32>
    %9 = arith.truncf %8 : vector<16x512xf32> to vector<16x512xbf16>
    %c0_6 = arith.constant 0 : index
    %c0_7 = arith.constant 0 : index
    %10 = vector.load %arg4[%c0_6, %c0_7] : memref<512x512xbf16, #tpu.memory_space<vmem>>, vector<512x512xbf16>
    %cst_8 = arith.constant dense<0.000000e+00> : vector<16x512xf32>
    %11 = tpu.matmul %9, %10, %cst_8 {dimension_numbers = #tpu.dot_dimension_numbers<[1], [0], [0], [1], [0, 0, 1, 1], [], []>} : vector<16x512xbf16>, vector<512x512xbf16>, vector<16x512xf32> -> vector<16x512xf32>
    %c0_9 = arith.constant 0 : index
    %c0_10 = arith.constant 0 : index
    %12 = vector.load %arg5[%c0_9, %c0_10] : memref<1x512xf32, #tpu.memory_space<vmem>>, vector<1x512xf32>
    %13 = vector.broadcast %12 : vector<1x512xf32> to vector<16x512xf32>
    %14 = arith.addf %11, %13 : vector<16x512xf32>
    %cst_11 = arith.constant 0.000000e+00 : f32
    %15 = vector.broadcast %cst_11 : f32 to vector<16x512xf32>
    %16 = arith.maximumf %14, %15 : vector<16x512xf32>
    %17 = arith.truncf %16 : vector<16x512xf32> to vector<16x512xbf16>
    %c0_12 = arith.constant 0 : index
    %c0_13 = arith.constant 0 : index
    %18 = vector.load %arg6[%c0_12, %c0_13] : memref<512x128xbf16, #tpu.memory_space<vmem>>, vector<512x128xbf16>
    %cst_14 = arith.constant dense<0.000000e+00> : vector<16x128xf32>
    %19 = tpu.matmul %17, %18, %cst_14 {dimension_numbers = #tpu.dot_dimension_numbers<[1], [0], [0], [1], [0, 0, 1, 1], [], []>} : vector<16x512xbf16>, vector<512x128xbf16>, vector<16x128xf32> -> vector<16x128xf32>
    %c0_15 = arith.constant 0 : index
    %c0_16 = arith.constant 0 : index
    %20 = vector.load %arg7[%c0_15, %c0_16] : memref<1x128xf32, #tpu.memory_space<vmem>>, vector<1x128xf32>
    %21 = vector.broadcast %20 : vector<1x128xf32> to vector<16x128xf32>
    %22 = arith.addf %19, %21 : vector<16x128xf32>
    %c0_17 = arith.constant 0 : index
    %c0_18 = arith.constant 0 : index
    %23 = vector.load %arg8[%c0_17, %c0_18] : memref<16x128xf32, #tpu.memory_space<vmem>>, vector<16x128xf32>
    tpu.vector_store %arg8[%c0_17, %c0_18], %22 {strides = array<i32>} : memref<16x128xf32, #tpu.memory_space<vmem>>, vector<16x128xf32>,
    return
  }
  func.func @transform_0(%arg0: i32) -> (i32, i32) {
    %c0_i32 = arith.constant 0 : i32
    %c0_i32_0 = arith.constant 0 : i32
    return %arg0, %c0_i32 : i32, i32
  }
  func.func @transform_1(%arg0: i32) -> (i32, i32) {
    %c0_i32 = arith.constant 0 : i32
    %c0_i32_0 = arith.constant 0 : i32
    %c0_i32_1 = arith.constant 0 : i32
    return %c0_i32, %c0_i32_0 : i32, i32
  }
  func.func @transform_2(%arg0: i32) -> (i32, i32) {
    %c0_i32 = arith.constant 0 : i32
    %c0_i32_0 = arith.constant 0 : i32
    %c0_i32_1 = arith.constant 0 : i32
    return %c0_i32, %c0_i32_0 : i32, i32
  }
  func.func @transform_3(%arg0: i32) -> (i32, i32) {
    %c0_i32 = arith.constant 0 : i32
    %c0_i32_0 = arith.constant 0 : i32
    %c0_i32_1 = arith.constant 0 : i32
    return %c0_i32, %c0_i32_0 : i32, i32
  }
  func.func @transform_4(%arg0: i32) -> (i32, i32) {
    %c0_i32 = arith.constant 0 : i32
    %c0_i32_0 = arith.constant 0 : i32
    %c0_i32_1 = arith.constant 0 : i32
    return %c0_i32, %c0_i32_0 : i32, i32
  }
  func.func @transform_5(%arg0: i32) -> (i32, i32) {
    %c0_i32 = arith.constant 0 : i32
    %c0_i32_0 = arith.constant 0 : i32
    %c0_i32_1 = arith.constant 0 : i32
    return %c0_i32, %c0_i32_0 : i32, i32
  }
  func.func @transform_6(%arg0: i32) -> (i32, i32) {
    %c0_i32 = arith.constant 0 : i32
    %c0_i32_0 = arith.constant 0 : i32
    %c0_i32_1 = arith.constant 0 : i32
    return %c0_i32, %c0_i32_0 : i32, i32
  }
  func.func @transform_7(%arg0: i32) -> (i32, i32) {
    %c0_i32 = arith.constant 0 : i32
    %c0_i32_0 = arith.constant 0 : i32
    return %arg0, %c0_i32 : i32, i32
  }
}

</mosaic_0001>

<llo_original>
// kernel: neural_network_forward.1
$region0: #{neural_network_forward.1}
  #allocation0 [shape = 'u32[]', space=smem, size = 0x4, offset = 0x4, fixed_abs, tag = 'smem constant byte address 0x4 - core index']
  #allocation1 [shape = 'u32[144,128]{1,0:T(1,128)}', space=vmem, size = 0x12000, scoped, tag = 'internal scratch']
  %s0 = inlined_call_operand.vmem [shape: f32[16,896], index: 0, kind: input, shape index: {}]
  %s1 = inlined_call_operand.hbm [shape: bf16[896,512], index: 1, kind: input, shape index: {}]
  %s2 = inlined_call_operand.vmem [shape: f32[1,512], index: 2, kind: input, shape index: {}]
  %s3 = inlined_call_operand.hbm [shape: bf16[512,512], index: 3, kind: input, shape index: {}]
  %s4 = inlined_call_operand.vmem [shape: f32[1,512], index: 4, kind: input, shape index: {}]
  %s5 = inlined_call_operand.vmem [shape: bf16[512,128], index: 5, kind: input, shape index: {}]
  %s6 = inlined_call_operand.vmem [shape: f32[1,128], index: 6, kind: input, shape index: {}]
  %s7 = inlined_call_operand.vmem [shape: f32[16,128], index: 7, kind: output, shape index: {}]
  %s8 = sld [smem:[#allocation0]]
  $region46: #{neural_network_forward.1} parent=0
    _
  %s10 = ssub.s32 1, %s8
  %s11 = scalar_select 0, %s10, %s8
  $region1: #{neural_network_forward.1} parent=0
    #allocation2 [shape = 'u8[917504]{0}', space=vmem, size = 0xe0000, scoped, tag = 'input window, operand 1, single buffered']
    #allocation3 [shape = 's32[1]{0}', space=sflag, size = 0x4, scoped, tag = 'scoped memory for neural_network_forward.1']
    #allocation4 [shape = 'u8[524288]{0}', space=vmem, size = 0x80000, scoped, tag = 'input window, operand 3, single buffered']
    #allocation5 [shape = 's32[1]{0}', space=sflag, size = 0x4, scoped, tag = 'scoped memory for neural_network_forward.1']
    %12 = vsyncpa [#allocation3], 0
    %13 = vsyncpa [#allocation5], 0
    // Predicated region
    $region2: #{neural_network_forward.1} parent=1 // pred_check
      _
    $region3: #{neural_network_forward.1} parent=1 // pred_check_branch
      %15 = sbr.rel (0) target = $region5
    $region4: #{neural_network_forward.1} parent=1 // pred_region
      _
    $region5: #{neural_network_forward.1} parent=1 // pred_fallthru
      _
    // Predicated region
    $region6: #{neural_network_forward.1} parent=1 // pred_check
      _
    $region7: #{neural_network_forward.1} parent=1 // pred_check_branch
      %17 = sbr.rel (0) target = $region9
    $region8: #{neural_network_forward.1} parent=1 // pred_region
      %s19 = ssub.s32 28672, 28672
      %20 = vsyncadd [#allocation3], %s19
      %s21 = sshll.u32 [#allocation2], 4
      %s22 = int_to_ptr.vmem [resolvable:$true] %s21
      %27 = dma.hbm_to_vmem [thread:$0]  %s1, 28672, %s22, [#allocation3], 256, 256, 16
    $region9: #{neural_network_forward.1} parent=1 // pred_fallthru
      _
    // Predicated region
    $region10: #{neural_network_forward.1} parent=1 // pred_check
      _
    $region11: #{neural_network_forward.1} parent=1 // pred_check_branch
      %29 = sbr.rel (0) target = $region13
    $region12: #{neural_network_forward.1} parent=1 // pred_region
      _
    $region13: #{neural_network_forward.1} parent=1 // pred_fallthru
      _
    // Predicated region
    $region14: #{neural_network_forward.1} parent=1 // pred_check
      _
    $region15: #{neural_network_forward.1} parent=1 // pred_check_branch
      %31 = sbr.rel (0) target = $region17
    $region16: #{neural_network_forward.1} parent=1 // pred_region
      %s33 = ssub.s32 16384, 16384
      %34 = vsyncadd [#allocation5], %s33
      %s35 = sshll.u32 [#allocation4], 4
      %s36 = int_to_ptr.vmem [resolvable:$true] %s35
      %41 = dma.hbm_to_vmem [thread:$0]  %s3, 16384, %s36, [#allocation5], 256, 256, 16
    $region17: #{neural_network_forward.1} parent=1 // pred_fallthru
      _
    // Predicated region
    $region18: #{neural_network_forward.1} parent=1 // pred_check
      _
    $region19: #{neural_network_forward.1} parent=1 // pred_check_branch
      %43 = sbr.rel (0) target = $region21
    $region20: #{neural_network_forward.1} parent=1 // pred_region
      _
    $region21: #{neural_network_forward.1} parent=1 // pred_fallthru
      _
    // Predicated region
    $region22: #{neural_network_forward.1} parent=1 // pred_check
      _
    $region23: #{neural_network_forward.1} parent=1 // pred_check_branch
      %45 = sbr.rel (0) target = $region25
    $region24: #{neural_network_forward.1} parent=1 // pred_region
      _
    $region25: #{neural_network_forward.1} parent=1 // pred_fallthru
      _
    // Predicated region
    $region26: #{neural_network_forward.1} parent=1 // pred_check
      _
    $region27: #{neural_network_forward.1} parent=1 // pred_check_branch
      %47 = sbr.rel (0) target = $region29
    $region28: #{neural_network_forward.1} parent=1 // pred_region
      _
    $region29: #{neural_network_forward.1} parent=1 // pred_fallthru
      _
    // Predicated region
    $region30: #{neural_network_forward.1} parent=1 // pred_check
      _
    $region31: #{neural_network_forward.1} parent=1 // pred_check_branch
      %49 = sbr.rel (0) target = $region33
    $region32: #{neural_network_forward.1} parent=1 // pred_region
      %50 = dma.done [#allocation3], 28672
    $region33: #{neural_network_forward.1} parent=1 // pred_fallthru
      _
    // Predicated region
    $region34: #{neural_network_forward.1} parent=1 // pred_check
      _
    $region35: #{neural_network_forward.1} parent=1 // pred_check_branch
      %52 = sbr.rel (0) target = $region37
    $region36: #{neural_network_forward.1} parent=1 // pred_region
      %53 = dma.done [#allocation5], 16384
    $region37: #{neural_network_forward.1} parent=1 // pred_fallthru
      _
    %v55 = vld [vmem:[%s0] sm:$0xff]
    %v56 = vld [vmem:[%s0 + $0x8] sm:$0xff]
    %v57 = vld [vmem:[%s0 + $0x10] sm:$0xff]
    %v58 = vld [vmem:[%s0 + $0x18] sm:$0xff]
    %v59 = vld [vmem:[%s0 + $0x20] sm:$0xff]
    %v60 = vld [vmem:[%s0 + $0x28] sm:$0xff]
    %v61 = vld [vmem:[%s0 + $0x30] sm:$0xff]
    %v62 = vld [vmem:[%s0 + $0x38] sm:$0xff]
    %v63 = vld [vmem:[%s0 + $0x40] sm:$0xff]
    %v64 = vld [vmem:[%s0 + $0x48] sm:$0xff]
    %v65 = vld [vmem:[%s0 + $0x50] sm:$0xff]
    %v66 = vld [vmem:[%s0 + $0x58] sm:$0xff]
    %v67 = vld [vmem:[%s0 + $0x60] sm:$0xff]
    %v68 = vld [vmem:[%s0 + $0x68] sm:$0xff]
    %v69 = vpack.c.bf16 %v62, %v55
    %v70 = vpack.c.bf16 %v63, %v56
    %v71 = vpack.c.bf16 %v64, %v57
    %v72 = vpack.c.bf16 %v65, %v58
    %v73 = vpack.c.bf16 %v66, %v59
    %v74 = vpack.c.bf16 %v67, %v60
    %v75 = vpack.c.bf16 %v68, %v61
    %v76 = vld [vmem:[#allocation2] sm:$0xff]
    %v77 = vld [vmem:[#allocation2 + $0x8] sm:$0xff]
    %v78 = vld [vmem:[#allocation2 + $0x10] sm:$0xff]
    %v79 = vld [vmem:[#allocation2 + $0x18] sm:$0xff]
    %v80 = vld [vmem:[#allocation2 + $0x20] sm:$0xff]
    %v81 = vld [vmem:[#allocation2 + $0x28] sm:$0xff]
    %v82 = vld [vmem:[#allocation2 + $0x30] sm:$0xff]
    %v83 = vld [vmem:[#allocation2 + $0x38] sm:$0xff]
    %v84 = vld [vmem:[#allocation2 + $0x40] sm:$0xff]
    %v85 = vld [vmem:[#allocation2 + $0x48] sm:$0xff]
    %v86 = vld [vmem:[#allocation2 + $0x50] sm:$0xff]
    %v87 = vld [vmem:[#allocation2 + $0x58] sm:$0xff]
    %v88 = vld [vmem:[#allocation2 + $0x60] sm:$0xff]
    %v89 = vld [vmem:[#allocation2 + $0x68] sm:$0xff]
    %v90 = vld [vmem:[#allocation2 + $0x70] sm:$0xff]
    %v91 = vld [vmem:[#allocation2 + $0x78] sm:$0xff]
    %v92 = vld [vmem:[#allocation2 + $0x80] sm:$0xff]
    %v93 = vld [vmem:[#allocation2 + $0x88] sm:$0xff]
    %v94 = vld [vmem:[#allocation2 + $0x90] sm:$0xff]
    %v95 = vld [vmem:[#allocation2 + $0x98] sm:$0xff]
    %v96 = vld [vmem:[#allocation2 + $0xa0] sm:$0xff]
    %v97 = vld [vmem:[#allocation2 + $0xa8] sm:$0xff]
    %v98 = vld [vmem:[#allocation2 + $0xb0] sm:$0xff]
    %v99 = vld [vmem:[#allocation2 + $0xb8] sm:$0xff]
    %v100 = vld [vmem:[#allocation2 + $0xc0] sm:$0xff]
    %v101 = vld [vmem:[#allocation2 + $0xc8] sm:$0xff]
    %v102 = vld [vmem:[#allocation2 + $0xd0] sm:$0xff]
    %v103 = vld [vmem:[#allocation2 + $0xd8] sm:$0xff]
    %v104 = vld [vmem:[#allocation2 + $0xe0] sm:$0xff]
    %v105 = vld [vmem:[#allocation2 + $0xe8] sm:$0xff]
    %v106 = vld [vmem:[#allocation2 + $0xf0] sm:$0xff]
    %v107 = vld [vmem:[#allocation2 + $0xf8] sm:$0xff]
    %v108 = vld [vmem:[#allocation2 + $0x100] sm:$0xff]
    %v109 = vld [vmem:[#allocation2 + $0x108] sm:$0xff]
    %v110 = vld [vmem:[#allocation2 + $0x110] sm:$0xff]
    %v111 = vld [vmem:[#allocation2 + $0x118] sm:$0xff]
    %v112 = vld [vmem:[#allocation2 + $0x120] sm:$0xff]
    %v113 = vld [vmem:[#allocation2 + $0x128] sm:$0xff]
    %v114 = vld [vmem:[#allocation2 + $0x130] sm:$0xff]
    %v115 = vld [vmem:[#allocation2 + $0x138] sm:$0xff]
    %v116 = vld [vmem:[#allocation2 + $0x140] sm:$0xff]
    %v117 = vld [vmem:[#allocation2 + $0x148] sm:$0xff]
    %v118 = vld [vmem:[#allocation2 + $0x150] sm:$0xff]
    %v119 = vld [vmem:[#allocation2 + $0x158] sm:$0xff]
    %v120 = vld [vmem:[#allocation2 + $0x160] sm:$0xff]
    %v121 = vld [vmem:[#allocation2 + $0x168] sm:$0xff]
    %v122 = vld [vmem:[#allocation2 + $0x170] sm:$0xff]
    %v123 = vld [vmem:[#allocation2 + $0x178] sm:$0xff]
    %v124 = vld [vmem:[#allocation2 + $0x180] sm:$0xff]
    %v125 = vld [vmem:[#allocation2 + $0x188] sm:$0xff]
    %v126 = vld [vmem:[#allocation2 + $0x190] sm:$0xff]
    %v127 = vld [vmem:[#allocation2 + $0x198] sm:$0xff]
    %v128 = vld [vmem:[#allocation2 + $0x1a0] sm:$0xff]
    %v129 = vld [vmem:[#allocation2 + $0x1a8] sm:$0xff]
    %v130 = vld [vmem:[#allocation2 + $0x1b0] sm:$0xff]
    %v131 = vld [vmem:[#allocation2 + $0x1b8] sm:$0xff]
    %v132 = vld [vmem:[#allocation2 + $0x1c0] sm:$0xff]
    %v133 = vld [vmem:[#allocation2 + $0x1c8] sm:$0xff]
    %v134 = vld [vmem:[#allocation2 + $0x1d0] sm:$0xff]
    %v135 = vld [vmem:[#allocation2 + $0x1d8] sm:$0xff]
    %v136 = vld [vmem:[#allocation2 + $0x1e0] sm:$0xff]
    %v137 = vld [vmem:[#allocation2 + $0x1e8] sm:$0xff]
    %v138 = vld [vmem:[#allocation2 + $0x1f0] sm:$0xff]
    %v139 = vld [vmem:[#allocation2 + $0x1f8] sm:$0xff]
    %v140 = vld [vmem:[#allocation2 + $0x200] sm:$0xff]
    %v141 = vld [vmem:[#allocation2 + $0x208] sm:$0xff]
    %v142 = vld [vmem:[#allocation2 + $0x210] sm:$0xff]
    %v143 = vld [vmem:[#allocation2 + $0x218] sm:$0xff]
    %v144 = vld [vmem:[#allocation2 + $0x220] sm:$0xff]
    %v145 = vld [vmem:[#allocation2 + $0x228] sm:$0xff]
    %v146 = vld [vmem:[#allocation2 + $0x230] sm:$0xff]
    %v147 = vld [vmem:[#allocation2 + $0x238] sm:$0xff]
    %v148 = vld [vmem:[#allocation2 + $0x240] sm:$0xff]
    %v149 = vld [vmem:[#allocation2 + $0x248] sm:$0xff]
    %v150 = vld [vmem:[#allocation2 + $0x250] sm:$0xff]
    %v151 = vld [vmem:[#allocation2 + $0x258] sm:$0xff]
    %v152 = vld [vmem:[#allocation2 + $0x260] sm:$0xff]
    %v153 = vld [vmem:[#allocation2 + $0x268] sm:$0xff]
    %v154 = vld [vmem:[#allocation2 + $0x270] sm:$0xff]
    %v155 = vld [vmem:[#allocation2 + $0x278] sm:$0xff]
    %v156 = vld [vmem:[#allocation2 + $0x280] sm:$0xff]
    %v157 = vld [vmem:[#allocation2 + $0x288] sm:$0xff]
    %v158 = vld [vmem:[#allocation2 + $0x290] sm:$0xff]
    %v159 = vld [vmem:[#allocation2 + $0x298] sm:$0xff]
    %v160 = vld [vmem:[#allocation2 + $0x2a0] sm:$0xff]
    %v161 = vld [vmem:[#allocation2 + $0x2a8] sm:$0xff]
    %v162 = vld [vmem:[#allocation2 + $0x2b0] sm:$0xff]
    %v163 = vld [vmem:[#allocation2 + $0x2b8] sm:$0xff]
    %v164 = vld [vmem:[#allocation2 + $0x2c0] sm:$0xff]
    %v165 = vld [vmem:[#allocation2 + $0x2c8] sm:$0xff]
    %v166 = vld [vmem:[#allocation2 + $0x2d0] sm:$0xff]
    %v167 = vld [vmem:[#allocation2 + $0x2d8] sm:$0xff]
    %v168 = vld [vmem:[#allocation2 + $0x2e0] sm:$0xff]
    %v169 = vld [vmem:[#allocation2 + $0x2e8] sm:$0xff]
    %v170 = vld [vmem:[#allocation2 + $0x2f0] sm:$0xff]
    %v171 = vld [vmem:[#allocation2 + $0x2f8] sm:$0xff]
    %v172 = vld [vmem:[#allocation2 + $0x300] sm:$0xff]
    %v173 = vld [vmem:[#allocation2 + $0x308] sm:$0xff]
    %v174 = vld [vmem:[#allocation2 + $0x310] sm:$0xff]
    %v175 = vld [vmem:[#allocation2 + $0x318] sm:$0xff]
    %v176 = vld [vmem:[#allocation2 + $0x320] sm:$0xff]
    %v177 = vld [vmem:[#allocation2 + $0x328] sm:$0xff]
    %v178 = vld [vmem:[#allocation2 + $0x330] sm:$0xff]
    %v179 = vld [vmem:[#allocation2 + $0x338] sm:$0xff]
    %v180 = vld [vmem:[#allocation2 + $0x340] sm:$0xff]
    %v181 = vld [vmem:[#allocation2 + $0x348] sm:$0xff]
    %v182 = vld [vmem:[#allocation2 + $0x350] sm:$0xff]
    %v183 = vld [vmem:[#allocation2 + $0x358] sm:$0xff]
    %v184 = vld [vmem:[#allocation2 + $0x360] sm:$0xff]
    %v185 = vld [vmem:[#allocation2 + $0x368] sm:$0xff]
    %v186 = vld [vmem:[#allocation2 + $0x370] sm:$0xff]
    %v187 = vld [vmem:[#allocation2 + $0x378] sm:$0xff]
    %v188 = vld [vmem:[#allocation2 + $0x380] sm:$0xff]
    %v189 = vld [vmem:[#allocation2 + $0x388] sm:$0xff]
    %v190 = vld [vmem:[#allocation2 + $0x390] sm:$0xff]
    %v191 = vld [vmem:[#allocation2 + $0x398] sm:$0xff]
    %v192 = vld [vmem:[#allocation2 + $0x3a0] sm:$0xff]
    %v193 = vld [vmem:[#allocation2 + $0x3a8] sm:$0xff]
    %v194 = vld [vmem:[#allocation2 + $0x3b0] sm:$0xff]
    %v195 = vld [vmem:[#allocation2 + $0x3b8] sm:$0xff]
    %v196 = vld [vmem:[#allocation2 + $0x3c0] sm:$0xff]
    %v197 = vld [vmem:[#allocation2 + $0x3c8] sm:$0xff]
    %v198 = vld [vmem:[#allocation2 + $0x3d0] sm:$0xff]
    %v199 = vld [vmem:[#allocation2 + $0x3d8] sm:$0xff]
    %v200 = vld [vmem:[#allocation2 + $0x3e0] sm:$0xff]
    %v201 = vld [vmem:[#allocation2 + $0x3e8] sm:$0xff]
    %v202 = vld [vmem:[#allocation2 + $0x3f0] sm:$0xff]
    %v203 = vld [vmem:[#allocation2 + $0x3f8] sm:$0xff]
    %v204 = vld [vmem:[#allocation2 + $0x400] sm:$0xff]
    %v205 = vld [vmem:[#allocation2 + $0x408] sm:$0xff]
    %v206 = vld [vmem:[#allocation2 + $0x410] sm:$0xff]
    %v207 = vld [vmem:[#allocation2 + $0x418] sm:$0xff]
    %v208 = vld [vmem:[#allocation2 + $0x420] sm:$0xff]
    %v209 = vld [vmem:[#allocation2 + $0x428] sm:$0xff]
    %v210 = vld [vmem:[#allocation2 + $0x430] sm:$0xff]
    %v211 = vld [vmem:[#allocation2 + $0x438] sm:$0xff]
    %v212 = vld [vmem:[#allocation2 + $0x440] sm:$0xff]
    %v213 = vld [vmem:[#allocation2 + $0x448] sm:$0xff]
    %v214 = vld [vmem:[#allocation2 + $0x450] sm:$0xff]
    %v215 = vld [vmem:[#allocation2 + $0x458] sm:$0xff]
    %v216 = vld [vmem:[#allocation2 + $0x460] sm:$0xff]
    %v217 = vld [vmem:[#allocation2 + $0x468] sm:$0xff]
    %v218 = vld [vmem:[#allocation2 + $0x470] sm:$0xff]
    %v219 = vld [vmem:[#allocation2 + $0x478] sm:$0xff]
    %v220 = vld [vmem:[#allocation2 + $0x480] sm:$0xff]
    %v221 = vld [vmem:[#allocation2 + $0x488] sm:$0xff]
    %v222 = vld [vmem:[#allocation2 + $0x490] sm:$0xff]
    %v223 = vld [vmem:[#allocation2 + $0x498] sm:$0xff]
    %v224 = vld [vmem:[#allocation2 + $0x4a0] sm:$0xff]
    %v225 = vld [vmem:[#allocation2 + $0x4a8] sm:$0xff]
    %v226 = vld [vmem:[#allocation2 + $0x4b0] sm:$0xff]
    %v227 = vld [vmem:[#allocation2 + $0x4b8] sm:$0xff]
    %v228 = vld [vmem:[#allocation2 + $0x4c0] sm:$0xff]
    %v229 = vld [vmem:[#allocation2 + $0x4c8] sm:$0xff]
    %v230 = vld [vmem:[#allocation2 + $0x4d0] sm:$0xff]
    %v231 = vld [vmem:[#allocation2 + $0x4d8] sm:$0xff]
    %v232 = vld [vmem:[#allocation2 + $0x4e0] sm:$0xff]
    %v233 = vld [vmem:[#allocation2 + $0x4e8] sm:$0xff]
    %v234 = vld [vmem:[#allocation2 + $0x4f0] sm:$0xff]
    %v235 = vld [vmem:[#allocation2 + $0x4f8] sm:$0xff]
    %v236 = vld [vmem:[#allocation2 + $0x500] sm:$0xff]
    %v237 = vld [vmem:[#allocation2 + $0x508] sm:$0xff]
    %v238 = vld [vmem:[#allocation2 + $0x510] sm:$0xff]
    %v239 = vld [vmem:[#allocation2 + $0x518] sm:$0xff]
    %v240 = vld [vmem:[#allocation2 + $0x520] sm:$0xff]
    %v241 = vld [vmem:[#allocation2 + $0x528] sm:$0xff]
    %v242 = vld [vmem:[#allocation2 + $0x530] sm:$0xff]
    %v243 = vld [vmem:[#allocation2 + $0x538] sm:$0xff]
    %v244 = vld [vmem:[#allocation2 + $0x540] sm:$0xff]
    %v245 = vld [vmem:[#allocation2 + $0x548] sm:$0xff]
    %v246 = vld [vmem:[#allocation2 + $0x550] sm:$0xff]
    %v247 = vld [vmem:[#allocation2 + $0x558] sm:$0xff]
    %v248 = vld [vmem:[#allocation2 + $0x560] sm:$0xff]
    %v249 = vld [vmem:[#allocation2 + $0x568] sm:$0xff]
    %v250 = vld [vmem:[#allocation2 + $0x570] sm:$0xff]
    %v251 = vld [vmem:[#allocation2 + $0x578] sm:$0xff]
    %v252 = vld [vmem:[#allocation2 + $0x580] sm:$0xff]
    %v253 = vld [vmem:[#allocation2 + $0x588] sm:$0xff]
    %v254 = vld [vmem:[#allocation2 + $0x590] sm:$0xff]
    %v255 = vld [vmem:[#allocation2 + $0x598] sm:$0xff]
    %v256 = vld [vmem:[#allocation2 + $0x5a0] sm:$0xff]
    %v257 = vld [vmem:[#allocation2 + $0x5a8] sm:$0xff]
    %v258 = vld [vmem:[#allocation2 + $0x5b0] sm:$0xff]
    %v259 = vld [vmem:[#allocation2 + $0x5b8] sm:$0xff]
    %v260 = vld [vmem:[#allocation2 + $0x5c0] sm:$0xff]
    %v261 = vld [vmem:[#allocation2 + $0x5c8] sm:$0xff]
    %v262 = vld [vmem:[#allocation2 + $0x5d0] sm:$0xff]
    %v263 = vld [vmem:[#allocation2 + $0x5d8] sm:$0xff]
    %v264 = vld [vmem:[#allocation2 + $0x5e0] sm:$0xff]
    %v265 = vld [vmem:[#allocation2 + $0x5e8] sm:$0xff]
    %v266 = vld [vmem:[#allocation2 + $0x5f0] sm:$0xff]
    %v267 = vld [vmem:[#allocation2 + $0x5f8] sm:$0xff]
    %v268 = vld [vmem:[#allocation2 + $0x600] sm:$0xff]
    %v269 = vld [vmem:[#allocation2 + $0x608] sm:$0xff]
    %v270 = vld [vmem:[#allocation2 + $0x610] sm:$0xff]
    %v271 = vld [vmem:[#allocation2 + $0x618] sm:$0xff]
    %v272 = vld [vmem:[#allocation2 + $0x620] sm:$0xff]
    %v273 = vld [vmem:[#allocation2 + $0x628] sm:$0xff]
    %v274 = vld [vmem:[#allocation2 + $0x630] sm:$0xff]
    %v275 = vld [vmem:[#allocation2 + $0x638] sm:$0xff]
    %v276 = vld [vmem:[#allocation2 + $0x640] sm:$0xff]
    %v277 = vld [vmem:[#allocation2 + $0x648] sm:$0xff]
    %v278 = vld [vmem:[#allocation2 + $0x650] sm:$0xff]
    %v279 = vld [vmem:[#allocation2 + $0x658] sm:$0xff]
    %v280 = vld [vmem:[#allocation2 + $0x660] sm:$0xff]
    %v281 = vld [vmem:[#allocation2 + $0x668] sm:$0xff]
    %v282 = vld [vmem:[#allocation2 + $0x670] sm:$0xff]
    %v283 = vld [vmem:[#allocation2 + $0x678] sm:$0xff]
    %v284 = vld [vmem:[#allocation2 + $0x680] sm:$0xff]
    %v285 = vld [vmem:[#allocation2 + $0x688] sm:$0xff]
    %v286 = vld [vmem:[#allocation2 + $0x690] sm:$0xff]
    %v287 = vld [vmem:[#allocation2 + $0x698] sm:$0xff]
    %v288 = vld [vmem:[#allocation2 + $0x6a0] sm:$0xff]
    %v289 = vld [vmem:[#allocation2 + $0x6a8] sm:$0xff]
    %v290 = vld [vmem:[#allocation2 + $0x6b0] sm:$0xff]
    %v291 = vld [vmem:[#allocation2 + $0x6b8] sm:$0xff]
    %v292 = vld [vmem:[#allocation2 + $0x6c0] sm:$0xff]
    %v293 = vld [vmem:[#allocation2 + $0x6c8] sm:$0xff]
    %v294 = vld [vmem:[#allocation2 + $0x6d0] sm:$0xff]
    %v295 = vld [vmem:[#allocation2 + $0x6d8] sm:$0xff]
    %v296 = vld [vmem:[#allocation2 + $0x6e0] sm:$0xff]
    %v297 = vld [vmem:[#allocation2 + $0x6e8] sm:$0xff]
    %v298 = vld [vmem:[#allocation2 + $0x6f0] sm:$0xff]
    %v299 = vld [vmem:[#allocation2 + $0x6f8] sm:$0xff]
    %v300 = vld [vmem:[%s2] sm:$0xf]
    %v302 = vlaneseq
    %v303 = vshrl.u32 %v302, 7
    %v304 = vsub.s32 0, %v303
    %v305 = vrot.slane %v300, %v304
    %v306 = vlaneseq
    %v307 = vshrl.u32 %v306, 7
    %v308 = vsub.s32 1, %v307
    %v309 = vrot.slane %v300, %v308
    %v310 = vlaneseq
    %v311 = vshrl.u32 %v310, 7
    %v312 = vsub.s32 2, %v311
    %v313 = vrot.slane %v300, %v312
    %v314 = vlaneseq
    %v315 = vshrl.u32 %v314, 7
    %v316 = vsub.s32 3, %v315
    %v317 = vrot.slane %v300, %v316
    %v546 = vunpack.c.l.b16 %v76
    %v547 = vunpack.c.h.b16 %v76
    %v548 = vunpack.c.l.b16 %v77
    %v549 = vunpack.c.h.b16 %v77
    %v550 = vunpack.c.l.b16 %v78
    %v551 = vunpack.c.h.b16 %v78
    %v552 = vunpack.c.l.b16 %v79
    %v553 = vunpack.c.h.b16 %v79
    %v554 = vunpack.c.l.b16 %v80
    %v555 = vunpack.c.h.b16 %v80
    %v556 = vunpack.c.l.b16 %v81
    %v557 = vunpack.c.h.b16 %v81
    %v558 = vunpack.c.l.b16 %v82
    %v559 = vunpack.c.h.b16 %v82
    %v560 = vunpack.c.l.b16 %v83
    %v561 = vunpack.c.h.b16 %v83
    %v562 = vunpack.c.l.b16 %v84
    %v563 = vunpack.c.h.b16 %v84
    %v564 = vunpack.c.l.b16 %v85
    %v565 = vunpack.c.h.b16 %v85
    %v566 = vunpack.c.l.b16 %v86
    %v567 = vunpack.c.h.b16 %v86
    %v568 = vunpack.c.l.b16 %v87
    %v569 = vunpack.c.h.b16 %v87
    %v570 = vunpack.c.l.b16 %v88
    %v571 = vunpack.c.h.b16 %v88
    %v572 = vunpack.c.l.b16 %v89
    %v573 = vunpack.c.h.b16 %v89
    %v574 = vunpack.c.l.b16 %v90
    %v575 = vunpack.c.h.b16 %v90
    %v576 = vunpack.c.l.b16 %v91
    %v577 = vunpack.c.h.b16 %v91
    %v578 = vunpack.c.l.b16 %v92
    %v579 = vunpack.c.h.b16 %v92
    %v580 = vunpack.c.l.b16 %v93
    %v581 = vunpack.c.h.b16 %v93
    %v582 = vunpack.c.l.b16 %v94
    %v583 = vunpack.c.h.b16 %v94
    %v584 = vunpack.c.l.b16 %v95
    %v585 = vunpack.c.h.b16 %v95
    %v586 = vunpack.c.l.b16 %v96
    %v587 = vunpack.c.h.b16 %v96
    %v588 = vunpack.c.l.b16 %v97
    %v589 = vunpack.c.h.b16 %v97
    %v590 = vunpack.c.l.b16 %v98
    %v591 = vunpack.c.h.b16 %v98
    %v592 = vunpack.c.l.b16 %v99
    %v593 = vunpack.c.h.b16 %v99
    %v594 = vunpack.c.l.b16 %v100
    %v595 = vunpack.c.h.b16 %v100
    %v596 = vunpack.c.l.b16 %v101
    %v597 = vunpack.c.h.b16 %v101
    %v598 = vunpack.c.l.b16 %v102
    %v599 = vunpack.c.h.b16 %v102
    %v600 = vunpack.c.l.b16 %v103
    %v601 = vunpack.c.h.b16 %v103
    %v602 = vunpack.c.l.b16 %v104
    %v603 = vunpack.c.h.b16 %v104
    %v604 = vunpack.c.l.b16 %v105
    %v605 = vunpack.c.h.b16 %v105
    %v606 = vunpack.c.l.b16 %v106
    %v607 = vunpack.c.h.b16 %v106
    %v608 = vunpack.c.l.b16 %v107
    %v609 = vunpack.c.h.b16 %v107
    %v610 = vunpack.c.l.b16 %v108
    %v611 = vunpack.c.h.b16 %v108
    %v612 = vunpack.c.l.b16 %v109
    %v613 = vunpack.c.h.b16 %v109
    %v614 = vunpack.c.l.b16 %v110
    %v615 = vunpack.c.h.b16 %v110
    %v616 = vunpack.c.l.b16 %v111
    %v617 = vunpack.c.h.b16 %v111
    %v618 = vunpack.c.l.b16 %v112
    %v619 = vunpack.c.h.b16 %v112
    %v620 = vunpack.c.l.b16 %v113
    %v621 = vunpack.c.h.b16 %v113
    %v622 = vunpack.c.l.b16 %v114
    %v623 = vunpack.c.h.b16 %v114
    %v624 = vunpack.c.l.b16 %v115
    %v625 = vunpack.c.h.b16 %v115
    %v626 = vunpack.c.l.b16 %v116
    %v627 = vunpack.c.h.b16 %v116
    %v628 = vunpack.c.l.b16 %v117
    %v629 = vunpack.c.h.b16 %v117
    %v630 = vunpack.c.l.b16 %v118
    %v631 = vunpack.c.h.b16 %v118
    %v632 = vunpack.c.l.b16 %v119
    %v633 = vunpack.c.h.b16 %v119
    %v634 = vunpack.c.l.b16 %v120
    %v635 = vunpack.c.h.b16 %v120
    %v636 = vunpack.c.l.b16 %v121
    %v637 = vunpack.c.h.b16 %v121
    %v638 = vunpack.c.l.b16 %v122
    %v639 = vunpack.c.h.b16 %v122
    %v640 = vunpack.c.l.b16 %v123
    %v641 = vunpack.c.h.b16 %v123
    %v642 = vunpack.c.l.b16 %v124
    %v643 = vunpack.c.h.b16 %v124
    %v644 = vunpack.c.l.b16 %v125
    %v645 = vunpack.c.h.b16 %v125
    %v646 = vunpack.c.l.b16 %v126
    %v647 = vunpack.c.h.b16 %v126
    %v648 = vunpack.c.l.b16 %v127
    %v649 = vunpack.c.h.b16 %v127
    %v650 = vunpack.c.l.b16 %v128
    %v651 = vunpack.c.h.b16 %v128
    %v652 = vunpack.c.l.b16 %v129
    %v653 = vunpack.c.h.b16 %v129
    %v654 = vunpack.c.l.b16 %v130
    %v655 = vunpack.c.h.b16 %v130
    %v656 = vunpack.c.l.b16 %v131
    %v657 = vunpack.c.h.b16 %v131
    %v658 = vunpack.c.l.b16 %v132
    %v659 = vunpack.c.h.b16 %v132
    %v660 = vunpack.c.l.b16 %v133
    %v661 = vunpack.c.h.b16 %v133
    %v662 = vunpack.c.l.b16 %v134
    %v663 = vunpack.c.h.b16 %v134
    %v664 = vunpack.c.l.b16 %v135
    %v665 = vunpack.c.h.b16 %v135
    %v666 = vunpack.c.l.b16 %v136
    %v667 = vunpack.c.h.b16 %v136
    %v668 = vunpack.c.l.b16 %v137
    %v669 = vunpack.c.h.b16 %v137
    %v670 = vunpack.c.l.b16 %v138
    %v671 = vunpack.c.h.b16 %v138
    %v672 = vunpack.c.l.b16 %v139
    %v673 = vunpack.c.h.b16 %v139
    %v674 = vunpack.c.l.b16 %v140
    %v675 = vunpack.c.h.b16 %v140
    %v676 = vunpack.c.l.b16 %v141
    %v677 = vunpack.c.h.b16 %v141
    %v678 = vunpack.c.l.b16 %v142
    %v679 = vunpack.c.h.b16 %v142
    %v680 = vunpack.c.l.b16 %v143
    %v681 = vunpack.c.h.b16 %v143
    %v682 = vunpack.c.l.b16 %v144
    %v683 = vunpack.c.h.b16 %v144
    %v684 = vunpack.c.l.b16 %v145
    %v685 = vunpack.c.h.b16 %v145
    %v686 = vunpack.c.l.b16 %v146
    %v687 = vunpack.c.h.b16 %v146
    %v688 = vunpack.c.l.b16 %v147
    %v689 = vunpack.c.h.b16 %v147
    %v690 = vunpack.c.l.b16 %v148
    %v691 = vunpack.c.h.b16 %v148
    %v692 = vunpack.c.l.b16 %v149
    %v693 = vunpack.c.h.b16 %v149
    %v694 = vunpack.c.l.b16 %v150
    %v695 = vunpack.c.h.b16 %v150
    %v696 = vunpack.c.l.b16 %v151
    %v697 = vunpack.c.h.b16 %v151
    %v698 = vunpack.c.l.b16 %v152
    %v699 = vunpack.c.h.b16 %v152
    %v700 = vunpack.c.l.b16 %v153
    %v701 = vunpack.c.h.b16 %v153
    %v702 = vunpack.c.l.b16 %v154
    %v703 = vunpack.c.h.b16 %v154
    %v704 = vunpack.c.l.b16 %v155
    %v705 = vunpack.c.h.b16 %v155
    %v706 = vunpack.c.l.b16 %v156
    %v707 = vunpack.c.h.b16 %v156
    %v708 = vunpack.c.l.b16 %v157
    %v709 = vunpack.c.h.b16 %v157
    %v710 = vunpack.c.l.b16 %v158
    %v711 = vunpack.c.h.b16 %v158
    %v712 = vunpack.c.l.b16 %v159
    %v713 = vunpack.c.h.b16 %v159
    %v714 = vunpack.c.l.b16 %v160
    %v715 = vunpack.c.h.b16 %v160
    %v716 = vunpack.c.l.b16 %v161
    %v717 = vunpack.c.h.b16 %v161
    %v718 = vunpack.c.l.b16 %v162
    %v719 = vunpack.c.h.b16 %v162
    %v720 = vunpack.c.l.b16 %v163
    %v721 = vunpack.c.h.b16 %v163
    %v722 = vunpack.c.l.b16 %v164
    %v723 = vunpack.c.h.b16 %v164
    %v724 = vunpack.c.l.b16 %v165
    %v725 = vunpack.c.h.b16 %v165
    %v726 = vunpack.c.l.b16 %v166
    %v727 = vunpack.c.h.b16 %v166
    %v728 = vunpack.c.l.b16 %v167
    %v729 = vunpack.c.h.b16 %v167
    %v730 = vunpack.c.l.b16 %v168
    %v731 = vunpack.c.h.b16 %v168
    %v732 = vunpack.c.l.b16 %v169
    %v733 = vunpack.c.h.b16 %v169
    %v734 = vunpack.c.l.b16 %v170
    %v735 = vunpack.c.h.b16 %v170
    %v736 = vunpack.c.l.b16 %v171
    %v737 = vunpack.c.h.b16 %v171
    %v738 = vunpack.c.l.b16 %v172
    %v739 = vunpack.c.h.b16 %v172
    %v740 = vunpack.c.l.b16 %v173
    %v741 = vunpack.c.h.b16 %v173
    %v742 = vunpack.c.l.b16 %v174
    %v743 = vunpack.c.h.b16 %v174
    %v744 = vunpack.c.l.b16 %v175
    %v745 = vunpack.c.h.b16 %v175
    %v746 = vunpack.c.l.b16 %v176
    %v747 = vunpack.c.h.b16 %v176
    %v748 = vunpack.c.l.b16 %v177
    %v749 = vunpack.c.h.b16 %v177
    %v750 = vunpack.c.l.b16 %v178
    %v751 = vunpack.c.h.b16 %v178
    %v752 = vunpack.c.l.b16 %v179
    %v753 = vunpack.c.h.b16 %v179
    %v754 = vunpack.c.l.b16 %v180
    %v755 = vunpack.c.h.b16 %v180
    %v756 = vunpack.c.l.b16 %v181
    %v757 = vunpack.c.h.b16 %v181
    %v758 = vunpack.c.l.b16 %v182
    %v759 = vunpack.c.h.b16 %v182
    %v760 = vunpack.c.l.b16 %v183
    %v761 = vunpack.c.h.b16 %v183
    %v762 = vunpack.c.l.b16 %v184
    %v763 = vunpack.c.h.b16 %v184
    %v764 = vunpack.c.l.b16 %v185
    %v765 = vunpack.c.h.b16 %v185
    %v766 = vunpack.c.l.b16 %v186
    %v767 = vunpack.c.h.b16 %v186
    %v768 = vunpack.c.l.b16 %v187
    %v769 = vunpack.c.h.b16 %v187
    %v770 = vunpack.c.l.b16 %v188
    %v771 = vunpack.c.h.b16 %v188
    %v772 = vunpack.c.l.b16 %v189
    %v773 = vunpack.c.h.b16 %v189
    %v774 = vunpack.c.l.b16 %v190
    %v775 = vunpack.c.h.b16 %v190
    %v776 = vunpack.c.l.b16 %v191
    %v777 = vunpack.c.h.b16 %v191
    %v778 = vunpack.c.l.b16 %v192
    %v779 = vunpack.c.h.b16 %v192
    %v780 = vunpack.c.l.b16 %v193
    %v781 = vunpack.c.h.b16 %v193
    %v782 = vunpack.c.l.b16 %v194
    %v783 = vunpack.c.h.b16 %v194
    %v784 = vunpack.c.l.b16 %v195
    %v785 = vunpack.c.h.b16 %v195
    %v786 = vunpack.c.l.b16 %v196
    %v787 = vunpack.c.h.b16 %v196
    %v788 = vunpack.c.l.b16 %v197
    %v789 = vunpack.c.h.b16 %v197
    %v790 = vunpack.c.l.b16 %v198
    %v791 = vunpack.c.h.b16 %v198
    %v792 = vunpack.c.l.b16 %v199
    %v793 = vunpack.c.h.b16 %v199
    %v794 = vunpack.c.l.b16 %v200
    %v795 = vunpack.c.h.b16 %v200
    %v796 = vunpack.c.l.b16 %v201
    %v797 = vunpack.c.h.b16 %v201
    %v798 = vunpack.c.l.b16 %v202
    %v799 = vunpack.c.h.b16 %v202
    %v800 = vunpack.c.l.b16 %v203
    %v801 = vunpack.c.h.b16 %v203
    %v802 = vunpack.c.l.b16 %v204
    %v803 = vunpack.c.h.b16 %v204
    %v804 = vunpack.c.l.b16 %v205
    %v805 = vunpack.c.h.b16 %v205
    %v806 = vunpack.c.l.b16 %v206
    %v807 = vunpack.c.h.b16 %v206
    %v808 = vunpack.c.l.b16 %v207
    %v809 = vunpack.c.h.b16 %v207
    %v810 = vunpack.c.l.b16 %v208
    %v811 = vunpack.c.h.b16 %v208
    %v812 = vunpack.c.l.b16 %v209
    %v813 = vunpack.c.h.b16 %v209
    %v814 = vunpack.c.l.b16 %v210
    %v815 = vunpack.c.h.b16 %v210
    %v816 = vunpack.c.l.b16 %v211
    %v817 = vunpack.c.h.b16 %v211
    %v818 = vunpack.c.l.b16 %v212
    %v819 = vunpack.c.h.b16 %v212
    %v820 = vunpack.c.l.b16 %v213
    %v821 = vunpack.c.h.b16 %v213
    %v822 = vunpack.c.l.b16 %v214
    %v823 = vunpack.c.h.b16 %v214
    %v824 = vunpack.c.l.b16 %v215
    %v825 = vunpack.c.h.b16 %v215
    %v826 = vunpack.c.l.b16 %v216
    %v827 = vunpack.c.h.b16 %v216
    %v828 = vunpack.c.l.b16 %v217
    %v829 = vunpack.c.h.b16 %v217
    %v830 = vunpack.c.l.b16 %v218
    %v831 = vunpack.c.h.b16 %v218
    %v832 = vunpack.c.l.b16 %v219
    %v833 = vunpack.c.h.b16 %v219
    %v834 = vunpack.c.l.b16 %v220
    %v835 = vunpack.c.h.b16 %v220
    %v836 = vunpack.c.l.b16 %v221
    %v837 = vunpack.c.h.b16 %v221
    %v838 = vunpack.c.l.b16 %v222
    %v839 = vunpack.c.h.b16 %v222
    %v840 = vunpack.c.l.b16 %v223
    %v841 = vunpack.c.h.b16 %v223
    %v842 = vunpack.c.l.b16 %v224
    %v843 = vunpack.c.h.b16 %v224
    %v844 = vunpack.c.l.b16 %v225
    %v845 = vunpack.c.h.b16 %v225
    %v846 = vunpack.c.l.b16 %v226
    %v847 = vunpack.c.h.b16 %v226
    %v848 = vunpack.c.l.b16 %v227
    %v849 = vunpack.c.h.b16 %v227
    %v850 = vunpack.c.l.b16 %v228
    %v851 = vunpack.c.h.b16 %v228
    %v852 = vunpack.c.l.b16 %v229
    %v853 = vunpack.c.h.b16 %v229
    %v854 = vunpack.c.l.b16 %v230
    %v855 = vunpack.c.h.b16 %v230
    %v856 = vunpack.c.l.b16 %v231
    %v857 = vunpack.c.h.b16 %v231
    %v858 = vunpack.c.l.b16 %v232
    %v859 = vunpack.c.h.b16 %v232
    %v860 = vunpack.c.l.b16 %v233
    %v861 = vunpack.c.h.b16 %v233
    %v862 = vunpack.c.l.b16 %v234
    %v863 = vunpack.c.h.b16 %v234
    %v864 = vunpack.c.l.b16 %v235
    %v865 = vunpack.c.h.b16 %v235
    %v866 = vunpack.c.l.b16 %v236
    %v867 = vunpack.c.h.b16 %v236
    %v868 = vunpack.c.l.b16 %v237
    %v869 = vunpack.c.h.b16 %v237
    %v870 = vunpack.c.l.b16 %v238
    %v871 = vunpack.c.h.b16 %v238
    %v872 = vunpack.c.l.b16 %v239
    %v873 = vunpack.c.h.b16 %v239
    %v874 = vunpack.c.l.b16 %v240
    %v875 = vunpack.c.h.b16 %v240
    %v876 = vunpack.c.l.b16 %v241
    %v877 = vunpack.c.h.b16 %v241
    %v878 = vunpack.c.l.b16 %v242
    %v879 = vunpack.c.h.b16 %v242
    %v880 = vunpack.c.l.b16 %v243
    %v881 = vunpack.c.h.b16 %v243
    %v882 = vunpack.c.l.b16 %v244
    %v883 = vunpack.c.h.b16 %v244
    %v884 = vunpack.c.l.b16 %v245
    %v885 = vunpack.c.h.b16 %v245
    %v886 = vunpack.c.l.b16 %v246
    %v887 = vunpack.c.h.b16 %v246
    %v888 = vunpack.c.l.b16 %v247
    %v889 = vunpack.c.h.b16 %v247
    %v890 = vunpack.c.l.b16 %v248
    %v891 = vunpack.c.h.b16 %v248
    %v892 = vunpack.c.l.b16 %v249
    %v893 = vunpack.c.h.b16 %v249
    %v894 = vunpack.c.l.b16 %v250
    %v895 = vunpack.c.h.b16 %v250
    %v896 = vunpack.c.l.b16 %v251
    %v897 = vunpack.c.h.b16 %v251
    %v898 = vunpack.c.l.b16 %v252
    %v899 = vunpack.c.h.b16 %v252
    %v900 = vunpack.c.l.b16 %v253
    %v901 = vunpack.c.h.b16 %v253
    %v902 = vunpack.c.l.b16 %v254
    %v903 = vunpack.c.h.b16 %v254
    %v904 = vunpack.c.l.b16 %v255
    %v905 = vunpack.c.h.b16 %v255
    %v906 = vunpack.c.l.b16 %v256
    %v907 = vunpack.c.h.b16 %v256
    %v908 = vunpack.c.l.b16 %v257
    %v909 = vunpack.c.h.b16 %v257
    %v910 = vunpack.c.l.b16 %v258
    %v911 = vunpack.c.h.b16 %v258
    %v912 = vunpack.c.l.b16 %v259
    %v913 = vunpack.c.h.b16 %v259
    %v914 = vunpack.c.l.b16 %v260
    %v915 = vunpack.c.h.b16 %v260
    %v916 = vunpack.c.l.b16 %v261
    %v917 = vunpack.c.h.b16 %v261
    %v918 = vunpack.c.l.b16 %v262
    %v919 = vunpack.c.h.b16 %v262
    %v920 = vunpack.c.l.b16 %v263
    %v921 = vunpack.c.h.b16 %v263
    %v922 = vunpack.c.l.b16 %v264
    %v923 = vunpack.c.h.b16 %v264
    %v924 = vunpack.c.l.b16 %v265
    %v925 = vunpack.c.h.b16 %v265
    %v926 = vunpack.c.l.b16 %v266
    %v927 = vunpack.c.h.b16 %v266
    %v928 = vunpack.c.l.b16 %v267
    %v929 = vunpack.c.h.b16 %v267
    %v930 = vunpack.c.l.b16 %v268
    %v931 = vunpack.c.h.b16 %v268
    %v932 = vunpack.c.l.b16 %v269
    %v933 = vunpack.c.h.b16 %v269
    %v934 = vunpack.c.l.b16 %v270
    %v935 = vunpack.c.h.b16 %v270
    %v936 = vunpack.c.l.b16 %v271
    %v937 = vunpack.c.h.b16 %v271
    %v938 = vunpack.c.l.b16 %v272
    %v939 = vunpack.c.h.b16 %v272
    %v940 = vunpack.c.l.b16 %v273
    %v941 = vunpack.c.h.b16 %v273
    %v942 = vunpack.c.l.b16 %v274
    %v943 = vunpack.c.h.b16 %v274
    %v944 = vunpack.c.l.b16 %v275
    %v945 = vunpack.c.h.b16 %v275
    %v946 = vunpack.c.l.b16 %v276
    %v947 = vunpack.c.h.b16 %v276
    %v948 = vunpack.c.l.b16 %v277
    %v949 = vunpack.c.h.b16 %v277
    %v950 = vunpack.c.l.b16 %v278
    %v951 = vunpack.c.h.b16 %v278
    %v952 = vunpack.c.l.b16 %v279
    %v953 = vunpack.c.h.b16 %v279
    %v954 = vunpack.c.l.b16 %v280
    %v955 = vunpack.c.h.b16 %v280
    %v956 = vunpack.c.l.b16 %v281
    %v957 = vunpack.c.h.b16 %v281
    %v958 = vunpack.c.l.b16 %v282
    %v959 = vunpack.c.h.b16 %v282
    %v960 = vunpack.c.l.b16 %v283
    %v961 = vunpack.c.h.b16 %v283
    %v962 = vunpack.c.l.b16 %v284
    %v963 = vunpack.c.h.b16 %v284
    %v964 = vunpack.c.l.b16 %v285
    %v965 = vunpack.c.h.b16 %v285
    %v966 = vunpack.c.l.b16 %v286
    %v967 = vunpack.c.h.b16 %v286
    %v968 = vunpack.c.l.b16 %v287
    %v969 = vunpack.c.h.b16 %v287
    %v970 = vunpack.c.l.b16 %v288
    %v971 = vunpack.c.h.b16 %v288
    %v972 = vunpack.c.l.b16 %v289
    %v973 = vunpack.c.h.b16 %v289
    %v974 = vunpack.c.l.b16 %v290
    %v975 = vunpack.c.h.b16 %v290
    %v976 = vunpack.c.l.b16 %v291
    %v977 = vunpack.c.h.b16 %v291
    %v978 = vunpack.c.l.b16 %v292
    %v979 = vunpack.c.h.b16 %v292
    %v980 = vunpack.c.l.b16 %v293
    %v981 = vunpack.c.h.b16 %v293
    %v982 = vunpack.c.l.b16 %v294
    %v983 = vunpack.c.h.b16 %v294
    %v984 = vunpack.c.l.b16 %v295
    %v985 = vunpack.c.h.b16 %v295
    %v986 = vunpack.c.l.b16 %v296
    %v987 = vunpack.c.h.b16 %v296
    %v988 = vunpack.c.l.b16 %v297
    %v989 = vunpack.c.h.b16 %v297
    %v990 = vunpack.c.l.b16 %v298
    %v991 = vunpack.c.h.b16 %v298
    %v992 = vunpack.c.l.b16 %v299
    %v993 = vunpack.c.h.b16 %v299
    %v994 = vpack.c.b16 %v550, %v546
    %v995 = vpack.c.b16 %v551, %v547
    %v996 = vpack.c.b16 %v552, %v548
    %v997 = vpack.c.b16 %v553, %v549
    %v998 = vpack.c.b16 %v558, %v554
    %v999 = vpack.c.b16 %v559, %v555
    %v1000 = vpack.c.b16 %v560, %v556
    %v1001 = vpack.c.b16 %v561, %v557
    %v1002 = vpack.c.b16 %v566, %v562
    %v1003 = vpack.c.b16 %v567, %v563
    %v1004 = vpack.c.b16 %v568, %v564
    %v1005 = vpack.c.b16 %v569, %v565
    %v1006 = vpack.c.b16 %v574, %v570
    %v1007 = vpack.c.b16 %v575, %v571
    %v1008 = vpack.c.b16 %v576, %v572
    %v1009 = vpack.c.b16 %v577, %v573
    %v1010 = vpack.c.b16 %v582, %v578
    %v1011 = vpack.c.b16 %v583, %v579
    %v1012 = vpack.c.b16 %v584, %v580
    %v1013 = vpack.c.b16 %v585, %v581
    %v1014 = vpack.c.b16 %v590, %v586
    %v1015 = vpack.c.b16 %v591, %v587
    %v1016 = vpack.c.b16 %v592, %v588
    %v1017 = vpack.c.b16 %v593, %v589
    %v1018 = vpack.c.b16 %v598, %v594
    %v1019 = vpack.c.b16 %v599, %v595
    %v1020 = vpack.c.b16 %v600, %v596
    %v1021 = vpack.c.b16 %v601, %v597
    %v1022 = vpack.c.b16 %v606, %v602
    %v1023 = vpack.c.b16 %v607, %v603
    %v1024 = vpack.c.b16 %v608, %v604
    %v1025 = vpack.c.b16 %v609, %v605
    %v1026 = vpack.c.b16 %v614, %v610
    %v1027 = vpack.c.b16 %v615, %v611
    %v1028 = vpack.c.b16 %v616, %v612
    %v1029 = vpack.c.b16 %v617, %v613
    %v1030 = vpack.c.b16 %v622, %v618
    %v1031 = vpack.c.b16 %v623, %v619
    %v1032 = vpack.c.b16 %v624, %v620
    %v1033 = vpack.c.b16 %v625, %v621
    %v1034 = vpack.c.b16 %v630, %v626
    %v1035 = vpack.c.b16 %v631, %v627
    %v1036 = vpack.c.b16 %v632, %v628
    %v1037 = vpack.c.b16 %v633, %v629
    %v1038 = vpack.c.b16 %v638, %v634
    %v1039 = vpack.c.b16 %v639, %v635
    %v1040 = vpack.c.b16 %v640, %v636
    %v1041 = vpack.c.b16 %v641, %v637
    %v1042 = vpack.c.b16 %v646, %v642
    %v1043 = vpack.c.b16 %v647, %v643
    %v1044 = vpack.c.b16 %v648, %v644
    %v1045 = vpack.c.b16 %v649, %v645
    %v1046 = vpack.c.b16 %v654, %v650
    %v1047 = vpack.c.b16 %v655, %v651
    %v1048 = vpack.c.b16 %v656, %v652
    %v1049 = vpack.c.b16 %v657, %v653
    %v1050 = vpack.c.b16 %v662, %v658
    %v1051 = vpack.c.b16 %v663, %v659
    %v1052 = vpack.c.b16 %v664, %v660
    %v1053 = vpack.c.b16 %v665, %v661
    %v1054 = vpack.c.b16 %v670, %v666
    %v1055 = vpack.c.b16 %v671, %v667
    %v1056 = vpack.c.b16 %v672, %v668
    %v1057 = vpack.c.b16 %v673, %v669
    %v1058 = vpack.c.b16 %v678, %v674
    %v1059 = vpack.c.b16 %v679, %v675
    %v1060 = vpack.c.b16 %v680, %v676
    %v1061 = vpack.c.b16 %v681, %v677
    %v1062 = vpack.c.b16 %v686, %v682
    %v1063 = vpack.c.b16 %v687, %v683
    %v1064 = vpack.c.b16 %v688, %v684
    %v1065 = vpack.c.b16 %v689, %v685
    %v1066 = vpack.c.b16 %v694, %v690
    %v1067 = vpack.c.b16 %v695, %v691
    %v1068 = vpack.c.b16 %v696, %v692
    %v1069 = vpack.c.b16 %v697, %v693
    %v1070 = vpack.c.b16 %v702, %v698
    %v1071 = vpack.c.b16 %v703, %v699
    %v1072 = vpack.c.b16 %v704, %v700
    %v1073 = vpack.c.b16 %v705, %v701
    %v1074 = vpack.c.b16 %v710, %v706
    %v1075 = vpack.c.b16 %v711, %v707
    %v1076 = vpack.c.b16 %v712, %v708
    %v1077 = vpack.c.b16 %v713, %v709
    %v1078 = vpack.c.b16 %v718, %v714
    %v1079 = vpack.c.b16 %v719, %v715
    %v1080 = vpack.c.b16 %v720, %v716
    %v1081 = vpack.c.b16 %v721, %v717
    %v1082 = vpack.c.b16 %v726, %v722
    %v1083 = vpack.c.b16 %v727, %v723
    %v1084 = vpack.c.b16 %v728, %v724
    %v1085 = vpack.c.b16 %v729, %v725
    %v1086 = vpack.c.b16 %v734, %v730
    %v1087 = vpack.c.b16 %v735, %v731
    %v1088 = vpack.c.b16 %v736, %v732
    %v1089 = vpack.c.b16 %v737, %v733
    %v1090 = vpack.c.b16 %v742, %v738
    %v1091 = vpack.c.b16 %v743, %v739
    %v1092 = vpack.c.b16 %v744, %v740
    %v1093 = vpack.c.b16 %v745, %v741
    %v1094 = vpack.c.b16 %v750, %v746
    %v1095 = vpack.c.b16 %v751, %v747
    %v1096 = vpack.c.b16 %v752, %v748
    %v1097 = vpack.c.b16 %v753, %v749
    %v1098 = vpack.c.b16 %v758, %v754
    %v1099 = vpack.c.b16 %v759, %v755
    %v1100 = vpack.c.b16 %v760, %v756
    %v1101 = vpack.c.b16 %v761, %v757
    %v1102 = vpack.c.b16 %v766, %v762
    %v1103 = vpack.c.b16 %v767, %v763
    %v1104 = vpack.c.b16 %v768, %v764
    %v1105 = vpack.c.b16 %v769, %v765
    %v1106 = vpack.c.b16 %v774, %v770
    %v1107 = vpack.c.b16 %v775, %v771
    %v1108 = vpack.c.b16 %v776, %v772
    %v1109 = vpack.c.b16 %v777, %v773
    %v1110 = vpack.c.b16 %v782, %v778
    %v1111 = vpack.c.b16 %v783, %v779
    %v1112 = vpack.c.b16 %v784, %v780
    %v1113 = vpack.c.b16 %v785, %v781
    %v1114 = vpack.c.b16 %v790, %v786
    %v1115 = vpack.c.b16 %v791, %v787
    %v1116 = vpack.c.b16 %v792, %v788
    %v1117 = vpack.c.b16 %v793, %v789
    %v1118 = vpack.c.b16 %v798, %v794
    %v1119 = vpack.c.b16 %v799, %v795
    %v1120 = vpack.c.b16 %v800, %v796
    %v1121 = vpack.c.b16 %v801, %v797
    %v1122 = vpack.c.b16 %v806, %v802
    %v1123 = vpack.c.b16 %v807, %v803
    %v1124 = vpack.c.b16 %v808, %v804
    %v1125 = vpack.c.b16 %v809, %v805
    %v1126 = vpack.c.b16 %v814, %v810
    %v1127 = vpack.c.b16 %v815, %v811
    %v1128 = vpack.c.b16 %v816, %v812
    %v1129 = vpack.c.b16 %v817, %v813
    %v1130 = vpack.c.b16 %v822, %v818
    %v1131 = vpack.c.b16 %v823, %v819
    %v1132 = vpack.c.b16 %v824, %v820
    %v1133 = vpack.c.b16 %v825, %v821
    %v1134 = vpack.c.b16 %v830, %v826
    %v1135 = vpack.c.b16 %v831, %v827
    %v1136 = vpack.c.b16 %v832, %v828
    %v1137 = vpack.c.b16 %v833, %v829
    %v1138 = vpack.c.b16 %v838, %v834
    %v1139 = vpack.c.b16 %v839, %v835
    %v1140 = vpack.c.b16 %v840, %v836
    %v1141 = vpack.c.b16 %v841, %v837
    %v1142 = vpack.c.b16 %v846, %v842
    %v1143 = vpack.c.b16 %v847, %v843
    %v1144 = vpack.c.b16 %v848, %v844
    %v1145 = vpack.c.b16 %v849, %v845
    %v1146 = vpack.c.b16 %v854, %v850
    %v1147 = vpack.c.b16 %v855, %v851
    %v1148 = vpack.c.b16 %v856, %v852
    %v1149 = vpack.c.b16 %v857, %v853
    %v1150 = vpack.c.b16 %v862, %v858
    %v1151 = vpack.c.b16 %v863, %v859
    %v1152 = vpack.c.b16 %v864, %v860
    %v1153 = vpack.c.b16 %v865, %v861
    %v1154 = vpack.c.b16 %v870, %v866
    %v1155 = vpack.c.b16 %v871, %v867
    %v1156 = vpack.c.b16 %v872, %v868
    %v1157 = vpack.c.b16 %v873, %v869
    %v1158 = vpack.c.b16 %v878, %v874
    %v1159 = vpack.c.b16 %v879, %v875
    %v1160 = vpack.c.b16 %v880, %v876
    %v1161 = vpack.c.b16 %v881, %v877
    %v1162 = vpack.c.b16 %v886, %v882
    %v1163 = vpack.c.b16 %v887, %v883
    %v1164 = vpack.c.b16 %v888, %v884
    %v1165 = vpack.c.b16 %v889, %v885
    %v1166 = vpack.c.b16 %v894, %v890
    %v1167 = vpack.c.b16 %v895, %v891
    %v1168 = vpack.c.b16 %v896, %v892
    %v1169 = vpack.c.b16 %v897, %v893
    %v1170 = vpack.c.b16 %v902, %v898
    %v1171 = vpack.c.b16 %v903, %v899
    %v1172 = vpack.c.b16 %v904, %v900
    %v1173 = vpack.c.b16 %v905, %v901
    %v1174 = vpack.c.b16 %v910, %v906
    %v1175 = vpack.c.b16 %v911, %v907
    %v1176 = vpack.c.b16 %v912, %v908
    %v1177 = vpack.c.b16 %v913, %v909
    %v1178 = vpack.c.b16 %v918, %v914
    %v1179 = vpack.c.b16 %v919, %v915
    %v1180 = vpack.c.b16 %v920, %v916
    %v1181 = vpack.c.b16 %v921, %v917
    %v1182 = vpack.c.b16 %v926, %v922
    %v1183 = vpack.c.b16 %v927, %v923
    %v1184 = vpack.c.b16 %v928, %v924
    %v1185 = vpack.c.b16 %v929, %v925
    %v1186 = vpack.c.b16 %v934, %v930
    %v1187 = vpack.c.b16 %v935, %v931
    %v1188 = vpack.c.b16 %v936, %v932
    %v1189 = vpack.c.b16 %v937, %v933
    %v1190 = vpack.c.b16 %v942, %v938
    %v1191 = vpack.c.b16 %v943, %v939
    %v1192 = vpack.c.b16 %v944, %v940
    %v1193 = vpack.c.b16 %v945, %v941
    %v1194 = vpack.c.b16 %v950, %v946
    %v1195 = vpack.c.b16 %v951, %v947
    %v1196 = vpack.c.b16 %v952, %v948
    %v1197 = vpack.c.b16 %v953, %v949
    %v1198 = vpack.c.b16 %v958, %v954
    %v1199 = vpack.c.b16 %v959, %v955
    %v1200 = vpack.c.b16 %v960, %v956
    %v1201 = vpack.c.b16 %v961, %v957
    %v1202 = vpack.c.b16 %v966, %v962
    %v1203 = vpack.c.b16 %v967, %v963
    %v1204 = vpack.c.b16 %v968, %v964
    %v1205 = vpack.c.b16 %v969, %v965
    %v1206 = vpack.c.b16 %v974, %v970
    %v1207 = vpack.c.b16 %v975, %v971
    %v1208 = vpack.c.b16 %v976, %v972
    %v1209 = vpack.c.b16 %v977, %v973
    %v1210 = vpack.c.b16 %v982, %v978
    %v1211 = vpack.c.b16 %v983, %v979
    %v1212 = vpack.c.b16 %v984, %v980
    %v1213 = vpack.c.b16 %v985, %v981
    %v1214 = vpack.c.b16 %v990, %v986
    %v1215 = vpack.c.b16 %v991, %v987
    %v1216 = vpack.c.b16 %v992, %v988
    %v1217 = vpack.c.b16 %v993, %v989
    %1442 = vmatprep.subr.bf16.mxu0 %v995
    %1443 = vmatpush1.bf16.msra.mxu0 %v994
    %1444 = vmatprep.subr.bf16.mxu0 %v999
    %1445 = vmatpush1.bf16.msra.mxu0 %v998
    %1446 = vmatprep.subr.bf16.mxu0 %v1003
    %1447 = vmatpush1.bf16.msra.mxu0 %v1002
    %1448 = vmatprep.subr.bf16.mxu0 %v1007
    %1449 = vmatpush1.bf16.msra.mxu0 %v1006
    %1450 = vmatprep.subr.bf16.mxu0 %v1011
    %1451 = vmatpush1.bf16.msra.mxu0 %v1010
    %1452 = vmatprep.subr.bf16.mxu0 %v1015
    %1453 = vmatpush1.bf16.msra.mxu0 %v1014
    %1454 = vmatprep.subr.bf16.mxu0 %v1019
    %1455 = vmatpush1.bf16.msra.mxu0 %v1018
    %1456 = vmatprep.subr.bf16.mxu0 %v1023
    %1457 = vmatpush1.bf16.msra.mxu0 %v1022
    %1458 = vmatprep.subr.bf16.mxu0 %v1027
    %1459 = vmatpush1.bf16.msra.mxu0 %v1026
    %1460 = vmatprep.subr.bf16.mxu0 %v1031
    %1461 = vmatpush1.bf16.msra.mxu0 %v1030
    %1462 = vmatprep.subr.bf16.mxu0 %v1035
    %1463 = vmatpush1.bf16.msra.mxu0 %v1034
    %1464 = vmatprep.subr.bf16.mxu0 %v1039
    %1465 = vmatpush1.bf16.msra.mxu0 %v1038
    %1466 = vmatprep.subr.bf16.mxu0 %v1043
    %1467 = vmatpush1.bf16.msra.mxu0 %v1042
    %1468 = vmatprep.subr.bf16.mxu0 %v1047
    %1469 = vmatpush1.bf16.msra.mxu0 %v1046
    %1470 = vmatprep.subr.bf16.mxu0 %v1051
    %1471 = vmatpush1.bf16.msra.mxu0 %v1050
    %1472 = vmatprep.subr.bf16.mxu0 %v1055
    %1473 = vmatpush1.bf16.msra.mxu0 %v1054
    %1474 = vmatprep.mubr.bf16.mxu0 %v70
    %1475 = vmatmul.mubr.bf16.gmra.mrb[0].mxu0 %v69
    %v1476 = vpop.f32.mrb[0].mxu0
    %v1477 = vadd.f32 %v305, %v1476
    %v1478 = vpop.f32.mrb[0].mxu0
    %v1479 = vadd.f32 %v309, %v1478
    %v1480 = vpop.f32.mrb[0].mxu0
    %v1481 = vadd.f32 %v305, %v1480
    %v1482 = vpop.f32.mrb[0].mxu0
    %v1483 = vadd.f32 %v309, %v1482
    %1484 = vdwg.mxu0
    %1485 = vmatprep.subr.bf16.mxu0 %v1059
    %1486 = vmatpush1.bf16.msra.mxu0 %v1058
    %1487 = vmatprep.subr.bf16.mxu0 %v1063
    %1488 = vmatpush1.bf16.msra.mxu0 %v1062
    %1489 = vmatprep.subr.bf16.mxu0 %v1067
    %1490 = vmatpush1.bf16.msra.mxu0 %v1066
    %1491 = vmatprep.subr.bf16.mxu0 %v1071
    %1492 = vmatpush1.bf16.msra.mxu0 %v1070
    %1493 = vmatprep.subr.bf16.mxu0 %v1075
    %1494 = vmatpush1.bf16.msra.mxu0 %v1074
    %1495 = vmatprep.subr.bf16.mxu0 %v1079
    %1496 = vmatpush1.bf16.msra.mxu0 %v1078
    %1497 = vmatprep.subr.bf16.mxu0 %v1083
    %1498 = vmatpush1.bf16.msra.mxu0 %v1082
    %1499 = vmatprep.subr.bf16.mxu0 %v1087
    %1500 = vmatpush1.bf16.msra.mxu0 %v1086
    %1501 = vmatprep.subr.bf16.mxu0 %v1091
    %1502 = vmatpush1.bf16.msra.mxu0 %v1090
    %1503 = vmatprep.subr.bf16.mxu0 %v1095
    %1504 = vmatpush1.bf16.msra.mxu0 %v1094
    %1505 = vmatprep.subr.bf16.mxu0 %v1099
    %1506 = vmatpush1.bf16.msra.mxu0 %v1098
    %1507 = vmatprep.subr.bf16.mxu0 %v1103
    %1508 = vmatpush1.bf16.msra.mxu0 %v1102
    %1509 = vmatprep.subr.bf16.mxu0 %v1107
    %1510 = vmatpush1.bf16.msra.mxu0 %v1106
    %1511 = vmatprep.subr.bf16.mxu0 %v1111
    %1512 = vmatpush1.bf16.msra.mxu0 %v1110
    %1513 = vmatprep.subr.bf16.mxu0 %v1115
    %1514 = vmatpush1.bf16.msra.mxu0 %v1114
    %1515 = vmatprep.subr.bf16.mxu0 %v1119
    %1516 = vmatpush1.bf16.msra.mxu0 %v1118
    %1517 = vmatprep.mubr.bf16.mxu0 %v72
    %1518 = vmatmul.mubr.bf16.gmra.mrb[0].mxu0 %v71
    %v1519 = vpop.f32.mrb[0].mxu0
    %v1520 = vadd.f32 %v1477, %v1519
    %v1521 = vpop.f32.mrb[0].mxu0
    %v1522 = vadd.f32 %v1479, %v1521
    %v1523 = vpop.f32.mrb[0].mxu0
    %v1524 = vadd.f32 %v1481, %v1523
    %v1525 = vpop.f32.mrb[0].mxu0
    %v1526 = vadd.f32 %v1483, %v1525
    %1527 = vdwg.mxu0
    %1528 = vmatprep.subr.bf16.mxu0 %v1123
    %1529 = vmatpush1.bf16.msra.mxu0 %v1122
    %1530 = vmatprep.subr.bf16.mxu0 %v1127
    %1531 = vmatpush1.bf16.msra.mxu0 %v1126
    %1532 = vmatprep.subr.bf16.mxu0 %v1131
    %1533 = vmatpush1.bf16.msra.mxu0 %v1130
    %1534 = vmatprep.subr.bf16.mxu0 %v1135
    %1535 = vmatpush1.bf16.msra.mxu0 %v1134
    %1536 = vmatprep.subr.bf16.mxu0 %v1139
    %1537 = vmatpush1.bf16.msra.mxu0 %v1138
    %1538 = vmatprep.subr.bf16.mxu0 %v1143
    %1539 = vmatpush1.bf16.msra.mxu0 %v1142
    %1540 = vmatprep.subr.bf16.mxu0 %v1147
    %1541 = vmatpush1.bf16.msra.mxu0 %v1146
    %1542 = vmatprep.subr.bf16.mxu0 %v1151
    %1543 = vmatpush1.bf16.msra.mxu0 %v1150
    %1544 = vmatprep.subr.bf16.mxu0 %v1155
    %1545 = vmatpush1.bf16.msra.mxu0 %v1154
    %1546 = vmatprep.subr.bf16.mxu0 %v1159
    %1547 = vmatpush1.bf16.msra.mxu0 %v1158
    %1548 = vmatprep.subr.bf16.mxu0 %v1163
    %1549 = vmatpush1.bf16.msra.mxu0 %v1162
    %1550 = vmatprep.subr.bf16.mxu0 %v1167
    %1551 = vmatpush1.bf16.msra.mxu0 %v1166
    %1552 = vmatprep.subr.bf16.mxu0 %v1171
    %1553 = vmatpush1.bf16.msra.mxu0 %v1170
    %1554 = vmatprep.subr.bf16.mxu0 %v1175
    %1555 = vmatpush1.bf16.msra.mxu0 %v1174
    %1556 = vmatprep.subr.bf16.mxu0 %v1179
    %1557 = vmatpush1.bf16.msra.mxu0 %v1178
    %1558 = vmatprep.subr.bf16.mxu0 %v1183
    %1559 = vmatpush1.bf16.msra.mxu0 %v1182
    %1560 = vmatprep.mubr.bf16.mxu0 %v74
    %1561 = vmatmul.mubr.bf16.gmra.mrb[0].mxu0 %v73
    %v1562 = vpop.f32.mrb[0].mxu0
    %v1563 = vadd.f32 %v1520, %v1562
    %v1564 = vpop.f32.mrb[0].mxu0
    %v1565 = vadd.f32 %v1522, %v1564
    %v1566 = vpop.f32.mrb[0].mxu0
    %v1567 = vadd.f32 %v1524, %v1566
    %v1568 = vpop.f32.mrb[0].mxu0
    %v1569 = vadd.f32 %v1526, %v1568
    %1570 = vdwg.mxu0
    %1571 = vmatprep.subr.bf16.mxu0 %v1187
    %1572 = vmatpush1.bf16.msra.mxu0 %v1186
    %1573 = vmatprep.subr.bf16.mxu0 %v1191
    %1574 = vmatpush1.bf16.msra.mxu0 %v1190
    %1575 = vmatprep.subr.bf16.mxu0 %v1195
    %1576 = vmatpush1.bf16.msra.mxu0 %v1194
    %1577 = vmatprep.subr.bf16.mxu0 %v1199
    %1578 = vmatpush1.bf16.msra.mxu0 %v1198
    %1579 = vmatprep.subr.bf16.mxu0 %v1203
    %1580 = vmatpush1.bf16.msra.mxu0 %v1202
    %1581 = vmatprep.subr.bf16.mxu0 %v1207
    %1582 = vmatpush1.bf16.msra.mxu0 %v1206
    %1583 = vmatprep.subr.bf16.mxu0 %v1211
    %1584 = vmatpush1.bf16.msra.mxu0 %v1210
    %1585 = vmatprep.subr.bf16.mxu0 %v1215
    %1586 = vmatpush1.bf16.msra.mxu0 %v1214
    %1587 = vmatprep.subr.bf16.mxu0 0
    %1588 = vmatpush1.bf16.msra.mxu0 0
    %1589 = vmatprep.subr.bf16.mxu0 0
    %1590 = vmatpush1.bf16.msra.mxu0 0
    %1591 = vmatprep.subr.bf16.mxu0 0
    %1592 = vmatpush1.bf16.msra.mxu0 0
    %1593 = vmatprep.subr.bf16.mxu0 0
    %1594 = vmatpush1.bf16.msra.mxu0 0
    %1595 = vmatprep.subr.bf16.mxu0 0
    %1596 = vmatpush1.bf16.msra.mxu0 0
    %1597 = vmatprep.subr.bf16.mxu0 0
    %1598 = vmatpush1.bf16.msra.mxu0 0
    %1599 = vmatprep.subr.bf16.mxu0 0
    %1600 = vmatpush1.bf16.msra.mxu0 0
    %1601 = vmatprep.subr.bf16.mxu0 0
    %1602 = vmatpush1.bf16.msra.mxu0 0
    %1603 = vmatprep.mubr.bf16.mxu0 0
    %1604 = vmatmul.mubr.bf16.gmra.mrb[0].mxu0 %v75
    %v1605 = vpop.f32.mrb[0].mxu0
    %v1606 = vadd.f32 %v1563, %v1605
    %v1607 = vpop.f32.mrb[0].mxu0
    %v1608 = vadd.f32 %v1565, %v1607
    %v1609 = vpop.f32.mrb[0].mxu0
    %v1610 = vadd.f32 %v1567, %v1609
    %v1611 = vpop.f32.mrb[0].mxu0
    %v1612 = vadd.f32 %v1569, %v1611
    %1613 = vdwg.mxu0
    %1614 = vmatprep.subr.bf16.mxu0 %v997
    %1615 = vmatpush1.bf16.msra.mxu0 %v996
    %1616 = vmatprep.subr.bf16.mxu0 %v1001
    %1617 = vmatpush1.bf16.msra.mxu0 %v1000
    %1618 = vmatprep.subr.bf16.mxu0 %v1005
    %1619 = vmatpush1.bf16.msra.mxu0 %v1004
    %1620 = vmatprep.subr.bf16.mxu0 %v1009
    %1621 = vmatpush1.bf16.msra.mxu0 %v1008
    %1622 = vmatprep.subr.bf16.mxu0 %v1013
    %1623 = vmatpush1.bf16.msra.mxu0 %v1012
    %1624 = vmatprep.subr.bf16.mxu0 %v1017
    %1625 = vmatpush1.bf16.msra.mxu0 %v1016
    %1626 = vmatprep.subr.bf16.mxu0 %v1021
    %1627 = vmatpush1.bf16.msra.mxu0 %v1020
    %1628 = vmatprep.subr.bf16.mxu0 %v1025
    %1629 = vmatpush1.bf16.msra.mxu0 %v1024
    %1630 = vmatprep.subr.bf16.mxu0 %v1029
    %1631 = vmatpush1.bf16.msra.mxu0 %v1028
    %1632 = vmatprep.subr.bf16.mxu0 %v1033
    %1633 = vmatpush1.bf16.msra.mxu0 %v1032
    %1634 = vmatprep.subr.bf16.mxu0 %v1037
    %1635 = vmatpush1.bf16.msra.mxu0 %v1036
    %1636 = vmatprep.subr.bf16.mxu0 %v1041
    %1637 = vmatpush1.bf16.msra.mxu0 %v1040
    %1638 = vmatprep.subr.bf16.mxu0 %v1045
    %1639 = vmatpush1.bf16.msra.mxu0 %v1044
    %1640 = vmatprep.subr.bf16.mxu0 %v1049
    %1641 = vmatpush1.bf16.msra.mxu0 %v1048
    %1642 = vmatprep.subr.bf16.mxu0 %v1053
    %1643 = vmatpush1.bf16.msra.mxu0 %v1052
    %1644 = vmatprep.subr.bf16.mxu0 %v1057
    %1645 = vmatpush1.bf16.msra.mxu0 %v1056
    %1646 = vmatprep.mubr.bf16.mxu0 %v70
    %1647 = vmatmul.mubr.bf16.gmra.mrb[0].mxu0 %v69
    %v1648 = vpop.f32.mrb[0].mxu0
    %v1649 = vadd.f32 %v313, %v1648
    %v1650 = vpop.f32.mrb[0].mxu0
    %v1651 = vadd.f32 %v317, %v1650
    %v1652 = vpop.f32.mrb[0].mxu0
    %v1653 = vadd.f32 %v313, %v1652
    %v1654 = vpop.f32.mrb[0].mxu0
    %v1655 = vadd.f32 %v317, %v1654
    %1656 = vdwg.mxu0
    %1657 = vmatprep.subr.bf16.mxu0 %v1061
    %1658 = vmatpush1.bf16.msra.mxu0 %v1060
    %1659 = vmatprep.subr.bf16.mxu0 %v1065
    %1660 = vmatpush1.bf16.msra.mxu0 %v1064
    %1661 = vmatprep.subr.bf16.mxu0 %v1069
    %1662 = vmatpush1.bf16.msra.mxu0 %v1068
    %1663 = vmatprep.subr.bf16.mxu0 %v1073
    %1664 = vmatpush1.bf16.msra.mxu0 %v1072
    %1665 = vmatprep.subr.bf16.mxu0 %v1077
    %1666 = vmatpush1.bf16.msra.mxu0 %v1076
    %1667 = vmatprep.subr.bf16.mxu0 %v1081
    %1668 = vmatpush1.bf16.msra.mxu0 %v1080
    %1669 = vmatprep.subr.bf16.mxu0 %v1085
    %1670 = vmatpush1.bf16.msra.mxu0 %v1084
    %1671 = vmatprep.subr.bf16.mxu0 %v1089
    %1672 = vmatpush1.bf16.msra.mxu0 %v1088
    %1673 = vmatprep.subr.bf16.mxu0 %v1093
    %1674 = vmatpush1.bf16.msra.mxu0 %v1092
    %1675 = vmatprep.subr.bf16.mxu0 %v1097
    %1676 = vmatpush1.bf16.msra.mxu0 %v1096
    %1677 = vmatprep.subr.bf16.mxu0 %v1101
    %1678 = vmatpush1.bf16.msra.mxu0 %v1100
    %1679 = vmatprep.subr.bf16.mxu0 %v1105
    %1680 = vmatpush1.bf16.msra.mxu0 %v1104
    %1681 = vmatprep.subr.bf16.mxu0 %v1109
    %1682 = vmatpush1.bf16.msra.mxu0 %v1108
    %1683 = vmatprep.subr.bf16.mxu0 %v1113
    %1684 = vmatpush1.bf16.msra.mxu0 %v1112
    %1685 = vmatprep.subr.bf16.mxu0 %v1117
    %1686 = vmatpush1.bf16.msra.mxu0 %v1116
    %1687 = vmatprep.subr.bf16.mxu0 %v1121
    %1688 = vmatpush1.bf16.msra.mxu0 %v1120
    %1689 = vmatprep.mubr.bf16.mxu0 %v72
    %1690 = vmatmul.mubr.bf16.gmra.mrb[0].mxu0 %v71
    %v1691 = vpop.f32.mrb[0].mxu0
    %v1692 = vadd.f32 %v1649, %v1691
    %v1693 = vpop.f32.mrb[0].mxu0
    %v1694 = vadd.f32 %v1651, %v1693
    %v1695 = vpop.f32.mrb[0].mxu0
    %v1696 = vadd.f32 %v1653, %v1695
    %v1697 = vpop.f32.mrb[0].mxu0
    %v1698 = vadd.f32 %v1655, %v1697
    %1699 = vdwg.mxu0
    %1700 = vmatprep.subr.bf16.mxu0 %v1125
    %1701 = vmatpush1.bf16.msra.mxu0 %v1124
    %1702 = vmatprep.subr.bf16.mxu0 %v1129
    %1703 = vmatpush1.bf16.msra.mxu0 %v1128
    %1704 = vmatprep.subr.bf16.mxu0 %v1133
    %1705 = vmatpush1.bf16.msra.mxu0 %v1132
    %1706 = vmatprep.subr.bf16.mxu0 %v1137
    %1707 = vmatpush1.bf16.msra.mxu0 %v1136
    %1708 = vmatprep.subr.bf16.mxu0 %v1141
    %1709 = vmatpush1.bf16.msra.mxu0 %v1140
    %1710 = vmatprep.subr.bf16.mxu0 %v1145
    %1711 = vmatpush1.bf16.msra.mxu0 %v1144
    %1712 = vmatprep.subr.bf16.mxu0 %v1149
    %1713 = vmatpush1.bf16.msra.mxu0 %v1148
    %1714 = vmatprep.subr.bf16.mxu0 %v1153
    %1715 = vmatpush1.bf16.msra.mxu0 %v1152
    %1716 = vmatprep.subr.bf16.mxu0 %v1157
    %1717 = vmatpush1.bf16.msra.mxu0 %v1156
    %1718 = vmatprep.subr.bf16.mxu0 %v1161
    %1719 = vmatpush1.bf16.msra.mxu0 %v1160
    %1720 = vmatprep.subr.bf16.mxu0 %v1165
    %1721 = vmatpush1.bf16.msra.mxu0 %v1164
    %1722 = vmatprep.subr.bf16.mxu0 %v1169
    %1723 = vmatpush1.bf16.msra.mxu0 %v1168
    %1724 = vmatprep.subr.bf16.mxu0 %v1173
    %1725 = vmatpush1.bf16.msra.mxu0 %v1172
    %1726 = vmatprep.subr.bf16.mxu0 %v1177
    %1727 = vmatpush1.bf16.msra.mxu0 %v1176
    %1728 = vmatprep.subr.bf16.mxu0 %v1181
    %1729 = vmatpush1.bf16.msra.mxu0 %v1180
    %1730 = vmatprep.subr.bf16.mxu0 %v1185
    %1731 = vmatpush1.bf16.msra.mxu0 %v1184
    %1732 = vmatprep.mubr.bf16.mxu0 %v74
    %1733 = vmatmul.mubr.bf16.gmra.mrb[0].mxu0 %v73
    %v1734 = vpop.f32.mrb[0].mxu0
    %v1735 = vadd.f32 %v1692, %v1734
    %v1736 = vpop.f32.mrb[0].mxu0
    %v1737 = vadd.f32 %v1694, %v1736
    %v1738 = vpop.f32.mrb[0].mxu0
    %v1739 = vadd.f32 %v1696, %v1738
    %v1740 = vpop.f32.mrb[0].mxu0
    %v1741 = vadd.f32 %v1698, %v1740
    %1742 = vdwg.mxu0
    %1743 = vmatprep.subr.bf16.mxu0 %v1189
    %1744 = vmatpush1.bf16.msra.mxu0 %v1188
    %1745 = vmatprep.subr.bf16.mxu0 %v1193
    %1746 = vmatpush1.bf16.msra.mxu0 %v1192
    %1747 = vmatprep.subr.bf16.mxu0 %v1197
    %1748 = vmatpush1.bf16.msra.mxu0 %v1196
    %1749 = vmatprep.subr.bf16.mxu0 %v1201
    %1750 = vmatpush1.bf16.msra.mxu0 %v1200
    %1751 = vmatprep.subr.bf16.mxu0 %v1205
    %1752 = vmatpush1.bf16.msra.mxu0 %v1204
    %1753 = vmatprep.subr.bf16.mxu0 %v1209
    %1754 = vmatpush1.bf16.msra.mxu0 %v1208
    %1755 = vmatprep.subr.bf16.mxu0 %v1213
    %1756 = vmatpush1.bf16.msra.mxu0 %v1212
    %1757 = vmatprep.subr.bf16.mxu0 %v1217
    %1758 = vmatpush1.bf16.msra.mxu0 %v1216
    %1759 = vmatprep.subr.bf16.mxu0 0
    %1760 = vmatpush1.bf16.msra.mxu0 0
    %1761 = vmatprep.subr.bf16.mxu0 0
    %1762 = vmatpush1.bf16.msra.mxu0 0
    %1763 = vmatprep.subr.bf16.mxu0 0
    %1764 = vmatpush1.bf16.msra.mxu0 0
    %1765 = vmatprep.subr.bf16.mxu0 0
    %1766 = vmatpush1.bf16.msra.mxu0 0
    %1767 = vmatprep.subr.bf16.mxu0 0
    %1768 = vmatpush1.bf16.msra.mxu0 0
    %1769 = vmatprep.subr.bf16.mxu0 0
    %1770 = vmatpush1.bf16.msra.mxu0 0
    %1771 = vmatprep.subr.bf16.mxu0 0
    %1772 = vmatpush1.bf16.msra.mxu0 0
    %1773 = vmatprep.subr.bf16.mxu0 0
    %1774 = vmatpush1.bf16.msra.mxu0 0
    %1775 = vmatprep.mubr.bf16.mxu0 0
    %1776 = vmatmul.mubr.bf16.gmra.mrb[0].mxu0 %v75
    %v1777 = vpop.f32.mrb[0].mxu0
    %v1778 = vadd.f32 %v1735, %v1777
    %v1779 = vpop.f32.mrb[0].mxu0
    %v1780 = vadd.f32 %v1737, %v1779
    %v1781 = vpop.f32.mrb[0].mxu0
    %v1782 = vadd.f32 %v1739, %v1781
    %v1783 = vpop.f32.mrb[0].mxu0
    %v1784 = vadd.f32 %v1741, %v1783
    %1785 = vdwg.mxu0
    %v1786 = vmax.f32 %v1606, 0.0
    %v1787 = vmax.f32 %v1608, 0.0
    %v1788 = vmax.f32 %v1778, 0.0
    %v1789 = vmax.f32 %v1780, 0.0
    %v1790 = vmax.f32 %v1610, 0.0
    %v1791 = vmax.f32 %v1612, 0.0
    %v1792 = vmax.f32 %v1782, 0.0
    %v1793 = vmax.f32 %v1784, 0.0
    %v1794 = vpack.c.bf16 %v1790, %v1786
    %v1795 = vpack.c.bf16 %v1791, %v1787
    %v1796 = vpack.c.bf16 %v1792, %v1788
    %v1797 = vpack.c.bf16 %v1793, %v1789
    %v1798 = vld [vmem:[#allocation4] sm:$0xff]
    %v1799 = vld [vmem:[#allocation4 + $0x8] sm:$0xff]
    %v1800 = vld [vmem:[#allocation4 + $0x10] sm:$0xff]
    %v1801 = vld [vmem:[#allocation4 + $0x18] sm:$0xff]
    %v1802 = vld [vmem:[#allocation4 + $0x20] sm:$0xff]
    %v1803 = vld [vmem:[#allocation4 + $0x28] sm:$0xff]
    %v1804 = vld [vmem:[#allocation4 + $0x30] sm:$0xff]
    %v1805 = vld [vmem:[#allocation4 + $0x38] sm:$0xff]
    %v1806 = vld [vmem:[#allocation4 + $0x40] sm:$0xff]
    %v1807 = vld [vmem:[#allocation4 + $0x48] sm:$0xff]
    %v1808 = vld [vmem:[#allocation4 + $0x50] sm:$0xff]
    %v1809 = vld [vmem:[#allocation4 + $0x58] sm:$0xff]
    %v1810 = vld [vmem:[#allocation4 + $0x60] sm:$0xff]
    %v1811 = vld [vmem:[#allocation4 + $0x68] sm:$0xff]
    %v1812 = vld [vmem:[#allocation4 + $0x70] sm:$0xff]
    %v1813 = vld [vmem:[#allocation4 + $0x78] sm:$0xff]
    %v1814 = vld [vmem:[#allocation4 + $0x80] sm:$0xff]
    %v1815 = vld [vmem:[#allocation4 + $0x88] sm:$0xff]
    %v1816 = vld [vmem:[#allocation4 + $0x90] sm:$0xff]
    %v1817 = vld [vmem:[#allocation4 + $0x98] sm:$0xff]
    %v1818 = vld [vmem:[#allocation4 + $0xa0] sm:$0xff]
    %v1819 = vld [vmem:[#allocation4 + $0xa8] sm:$0xff]
    %v1820 = vld [vmem:[#allocation4 + $0xb0] sm:$0xff]
    %v1821 = vld [vmem:[#allocation4 + $0xb8] sm:$0xff]
    %v1822 = vld [vmem:[#allocation4 + $0xc0] sm:$0xff]
    %v1823 = vld [vmem:[#allocation4 + $0xc8] sm:$0xff]
    %v1824 = vld [vmem:[#allocation4 + $0xd0] sm:$0xff]
    %v1825 = vld [vmem:[#allocation4 + $0xd8] sm:$0xff]
    %v1826 = vld [vmem:[#allocation4 + $0xe0] sm:$0xff]
    %v1827 = vld [vmem:[#allocation4 + $0xe8] sm:$0xff]
    %v1828 = vld [vmem:[#allocation4 + $0xf0] sm:$0xff]
    %v1829 = vld [vmem:[#allocation4 + $0xf8] sm:$0xff]
    %v1830 = vld [vmem:[#allocation4 + $0x100] sm:$0xff]
    %v1831 = vld [vmem:[#allocation4 + $0x108] sm:$0xff]
    %v1832 = vld [vmem:[#allocation4 + $0x110] sm:$0xff]
    %v1833 = vld [vmem:[#allocation4 + $0x118] sm:$0xff]
    %v1834 = vld [vmem:[#allocation4 + $0x120] sm:$0xff]
    %v1835 = vld [vmem:[#allocation4 + $0x128] sm:$0xff]
    %v1836 = vld [vmem:[#allocation4 + $0x130] sm:$0xff]
    %v1837 = vld [vmem:[#allocation4 + $0x138] sm:$0xff]
    %v1838 = vld [vmem:[#allocation4 + $0x140] sm:$0xff]
    %v1839 = vld [vmem:[#allocation4 + $0x148] sm:$0xff]
    %v1840 = vld [vmem:[#allocation4 + $0x150] sm:$0xff]
    %v1841 = vld [vmem:[#allocation4 + $0x158] sm:$0xff]
    %v1842 = vld [vmem:[#allocation4 + $0x160] sm:$0xff]
    %v1843 = vld [vmem:[#allocation4 + $0x168] sm:$0xff]
    %v1844 = vld [vmem:[#allocation4 + $0x170] sm:$0xff]
    %v1845 = vld [vmem:[#allocation4 + $0x178] sm:$0xff]
    %v1846 = vld [vmem:[#allocation4 + $0x180] sm:$0xff]
    %v1847 = vld [vmem:[#allocation4 + $0x188] sm:$0xff]
    %v1848 = vld [vmem:[#allocation4 + $0x190] sm:$0xff]
    %v1849 = vld [vmem:[#allocation4 + $0x198] sm:$0xff]
    %v1850 = vld [vmem:[#allocation4 + $0x1a0] sm:$0xff]
    %v1851 = vld [vmem:[#allocation4 + $0x1a8] sm:$0xff]
    %v1852 = vld [vmem:[#allocation4 + $0x1b0] sm:$0xff]
    %v1853 = vld [vmem:[#allocation4 + $0x1b8] sm:$0xff]
    %v1854 = vld [vmem:[#allocation4 + $0x1c0] sm:$0xff]
    %v1855 = vld [vmem:[#allocation4 + $0x1c8] sm:$0xff]
    %v1856 = vld [vmem:[#allocation4 + $0x1d0] sm:$0xff]
    %v1857 = vld [vmem:[#allocation4 + $0x1d8] sm:$0xff]
    %v1858 = vld [vmem:[#allocation4 + $0x1e0] sm:$0xff]
    %v1859 = vld [vmem:[#allocation4 + $0x1e8] sm:$0xff]
    %v1860 = vld [vmem:[#allocation4 + $0x1f0] sm:$0xff]
    %v1861 = vld [vmem:[#allocation4 + $0x1f8] sm:$0xff]
    %v1862 = vld [vmem:[#allocation4 + $0x200] sm:$0xff]
    %v1863 = vld [vmem:[#allocation4 + $0x208] sm:$0xff]
    %v1864 = vld [vmem:[#allocation4 + $0x210] sm:$0xff]
    %v1865 = vld [vmem:[#allocation4 + $0x218] sm:$0xff]
    %v1866 = vld [vmem:[#allocation4 + $0x220] sm:$0xff]
    %v1867 = vld [vmem:[#allocation4 + $0x228] sm:$0xff]
    %v1868 = vld [vmem:[#allocation4 + $0x230] sm:$0xff]
    %v1869 = vld [vmem:[#allocation4 + $0x238] sm:$0xff]
    %v1870 = vld [vmem:[#allocation4 + $0x240] sm:$0xff]
    %v1871 = vld [vmem:[#allocation4 + $0x248] sm:$0xff]
    %v1872 = vld [vmem:[#allocation4 + $0x250] sm:$0xff]
    %v1873 = vld [vmem:[#allocation4 + $0x258] sm:$0xff]
    %v1874 = vld [vmem:[#allocation4 + $0x260] sm:$0xff]
    %v1875 = vld [vmem:[#allocation4 + $0x268] sm:$0xff]
    %v1876 = vld [vmem:[#allocation4 + $0x270] sm:$0xff]
    %v1877 = vld [vmem:[#allocation4 + $0x278] sm:$0xff]
    %v1878 = vld [vmem:[#allocation4 + $0x280] sm:$0xff]
    %v1879 = vld [vmem:[#allocation4 + $0x288] sm:$0xff]
    %v1880 = vld [vmem:[#allocation4 + $0x290] sm:$0xff]
    %v1881 = vld [vmem:[#allocation4 + $0x298] sm:$0xff]
    %v1882 = vld [vmem:[#allocation4 + $0x2a0] sm:$0xff]
    %v1883 = vld [vmem:[#allocation4 + $0x2a8] sm:$0xff]
    %v1884 = vld [vmem:[#allocation4 + $0x2b0] sm:$0xff]
    %v1885 = vld [vmem:[#allocation4 + $0x2b8] sm:$0xff]
    %v1886 = vld [vmem:[#allocation4 + $0x2c0] sm:$0xff]
    %v1887 = vld [vmem:[#allocation4 + $0x2c8] sm:$0xff]
    %v1888 = vld [vmem:[#allocation4 + $0x2d0] sm:$0xff]
    %v1889 = vld [vmem:[#allocation4 + $0x2d8] sm:$0xff]
    %v1890 = vld [vmem:[#allocation4 + $0x2e0] sm:$0xff]
    %v1891 = vld [vmem:[#allocation4 + $0x2e8] sm:$0xff]
    %v1892 = vld [vmem:[#allocation4 + $0x2f0] sm:$0xff]
    %v1893 = vld [vmem:[#allocation4 + $0x2f8] sm:$0xff]
    %v1894 = vld [vmem:[#allocation4 + $0x300] sm:$0xff]
    %v1895 = vld [vmem:[#allocation4 + $0x308] sm:$0xff]
    %v1896 = vld [vmem:[#allocation4 + $0x310] sm:$0xff]
    %v1897 = vld [vmem:[#allocation4 + $0x318] sm:$0xff]
    %v1898 = vld [vmem:[#allocation4 + $0x320] sm:$0xff]
    %v1899 = vld [vmem:[#allocation4 + $0x328] sm:$0xff]
    %v1900 = vld [vmem:[#allocation4 + $0x330] sm:$0xff]
    %v1901 = vld [vmem:[#allocation4 + $0x338] sm:$0xff]
    %v1902 = vld [vmem:[#allocation4 + $0x340] sm:$0xff]
    %v1903 = vld [vmem:[#allocation4 + $0x348] sm:$0xff]
    %v1904 = vld [vmem:[#allocation4 + $0x350] sm:$0xff]
    %v1905 = vld [vmem:[#allocation4 + $0x358] sm:$0xff]
    %v1906 = vld [vmem:[#allocation4 + $0x360] sm:$0xff]
    %v1907 = vld [vmem:[#allocation4 + $0x368] sm:$0xff]
    %v1908 = vld [vmem:[#allocation4 + $0x370] sm:$0xff]
    %v1909 = vld [vmem:[#allocation4 + $0x378] sm:$0xff]
    %v1910 = vld [vmem:[#allocation4 + $0x380] sm:$0xff]
    %v1911 = vld [vmem:[#allocation4 + $0x388] sm:$0xff]
    %v1912 = vld [vmem:[#allocation4 + $0x390] sm:$0xff]
    %v1913 = vld [vmem:[#allocation4 + $0x398] sm:$0xff]
    %v1914 = vld [vmem:[#allocation4 + $0x3a0] sm:$0xff]
    %v1915 = vld [vmem:[#allocation4 + $0x3a8] sm:$0xff]
    %v1916 = vld [vmem:[#allocation4 + $0x3b0] sm:$0xff]
    %v1917 = vld [vmem:[#allocation4 + $0x3b8] sm:$0xff]
    %v1918 = vld [vmem:[#allocation4 + $0x3c0] sm:$0xff]
    %v1919 = vld [vmem:[#allocation4 + $0x3c8] sm:$0xff]
    %v1920 = vld [vmem:[#allocation4 + $0x3d0] sm:$0xff]
    %v1921 = vld [vmem:[#allocation4 + $0x3d8] sm:$0xff]
    %v1922 = vld [vmem:[#allocation4 + $0x3e0] sm:$0xff]
    %v1923 = vld [vmem:[#allocation4 + $0x3e8] sm:$0xff]
    %v1924 = vld [vmem:[#allocation4 + $0x3f0] sm:$0xff]
    %v1925 = vld [vmem:[#allocation4 + $0x3f8] sm:$0xff]
    %v1926 = vld [vmem:[%s4] sm:$0xf]
    %v1928 = vlaneseq
    %v1929 = vshrl.u32 %v1928, 7
    %v1930 = vsub.s32 0, %v1929
    %v1931 = vrot.slane %v1926, %v1930
    %v1932 = vlaneseq
    %v1933 = vshrl.u32 %v1932, 7
    %v1934 = vsub.s32 1, %v1933
    %v1935 = vrot.slane %v1926, %v1934
    %v1936 = vlaneseq
    %v1937 = vshrl.u32 %v1936, 7
    %v1938 = vsub.s32 2, %v1937
    %v1939 = vrot.slane %v1926, %v1938
    %v1940 = vlaneseq
    %v1941 = vshrl.u32 %v1940, 7
    %v1942 = vsub.s32 3, %v1941
    %v1943 = vrot.slane %v1926, %v1942
    %v2076 = vunpack.c.l.b16 %v1798
    %v2077 = vunpack.c.h.b16 %v1798
    %v2078 = vunpack.c.l.b16 %v1799
    %v2079 = vunpack.c.h.b16 %v1799
    %v2080 = vunpack.c.l.b16 %v1800
    %v2081 = vunpack.c.h.b16 %v1800
    %v2082 = vunpack.c.l.b16 %v1801
    %v2083 = vunpack.c.h.b16 %v1801
    %v2084 = vunpack.c.l.b16 %v1802
    %v2085 = vunpack.c.h.b16 %v1802
    %v2086 = vunpack.c.l.b16 %v1803
    %v2087 = vunpack.c.h.b16 %v1803
    %v2088 = vunpack.c.l.b16 %v1804
    %v2089 = vunpack.c.h.b16 %v1804
    %v2090 = vunpack.c.l.b16 %v1805
    %v2091 = vunpack.c.h.b16 %v1805
    %v2092 = vunpack.c.l.b16 %v1806
    %v2093 = vunpack.c.h.b16 %v1806
    %v2094 = vunpack.c.l.b16 %v1807
    %v2095 = vunpack.c.h.b16 %v1807
    %v2096 = vunpack.c.l.b16 %v1808
    %v2097 = vunpack.c.h.b16 %v1808
    %v2098 = vunpack.c.l.b16 %v1809
    %v2099 = vunpack.c.h.b16 %v1809
    %v2100 = vunpack.c.l.b16 %v1810
    %v2101 = vunpack.c.h.b16 %v1810
    %v2102 = vunpack.c.l.b16 %v1811
    %v2103 = vunpack.c.h.b16 %v1811
    %v2104 = vunpack.c.l.b16 %v1812
    %v2105 = vunpack.c.h.b16 %v1812
    %v2106 = vunpack.c.l.b16 %v1813
    %v2107 = vunpack.c.h.b16 %v1813
    %v2108 = vunpack.c.l.b16 %v1814
    %v2109 = vunpack.c.h.b16 %v1814
    %v2110 = vunpack.c.l.b16 %v1815
    %v2111 = vunpack.c.h.b16 %v1815
    %v2112 = vunpack.c.l.b16 %v1816
    %v2113 = vunpack.c.h.b16 %v1816
    %v2114 = vunpack.c.l.b16 %v1817
    %v2115 = vunpack.c.h.b16 %v1817
    %v2116 = vunpack.c.l.b16 %v1818
    %v2117 = vunpack.c.h.b16 %v1818
    %v2118 = vunpack.c.l.b16 %v1819
    %v2119 = vunpack.c.h.b16 %v1819
    %v2120 = vunpack.c.l.b16 %v1820
    %v2121 = vunpack.c.h.b16 %v1820
    %v2122 = vunpack.c.l.b16 %v1821
    %v2123 = vunpack.c.h.b16 %v1821
    %v2124 = vunpack.c.l.b16 %v1822
    %v2125 = vunpack.c.h.b16 %v1822
    %v2126 = vunpack.c.l.b16 %v1823
    %v2127 = vunpack.c.h.b16 %v1823
    %v2128 = vunpack.c.l.b16 %v1824
    %v2129 = vunpack.c.h.b16 %v1824
    %v2130 = vunpack.c.l.b16 %v1825
    %v2131 = vunpack.c.h.b16 %v1825
    %v2132 = vunpack.c.l.b16 %v1826
    %v2133 = vunpack.c.h.b16 %v1826
    %v2134 = vunpack.c.l.b16 %v1827
    %v2135 = vunpack.c.h.b16 %v1827
    %v2136 = vunpack.c.l.b16 %v1828
    %v2137 = vunpack.c.h.b16 %v1828
    %v2138 = vunpack.c.l.b16 %v1829
    %v2139 = vunpack.c.h.b16 %v1829
    %v2140 = vunpack.c.l.b16 %v1830
    %v2141 = vunpack.c.h.b16 %v1830
    %v2142 = vunpack.c.l.b16 %v1831
    %v2143 = vunpack.c.h.b16 %v1831
    %v2144 = vunpack.c.l.b16 %v1832
    %v2145 = vunpack.c.h.b16 %v1832
    %v2146 = vunpack.c.l.b16 %v1833
    %v2147 = vunpack.c.h.b16 %v1833
    %v2148 = vunpack.c.l.b16 %v1834
    %v2149 = vunpack.c.h.b16 %v1834
    %v2150 = vunpack.c.l.b16 %v1835
    %v2151 = vunpack.c.h.b16 %v1835
    %v2152 = vunpack.c.l.b16 %v1836
    %v2153 = vunpack.c.h.b16 %v1836
    %v2154 = vunpack.c.l.b16 %v1837
    %v2155 = vunpack.c.h.b16 %v1837
    %v2156 = vunpack.c.l.b16 %v1838
    %v2157 = vunpack.c.h.b16 %v1838
    %v2158 = vunpack.c.l.b16 %v1839
    %v2159 = vunpack.c.h.b16 %v1839
    %v2160 = vunpack.c.l.b16 %v1840
    %v2161 = vunpack.c.h.b16 %v1840
    %v2162 = vunpack.c.l.b16 %v1841
    %v2163 = vunpack.c.h.b16 %v1841
    %v2164 = vunpack.c.l.b16 %v1842
    %v2165 = vunpack.c.h.b16 %v1842
    %v2166 = vunpack.c.l.b16 %v1843
    %v2167 = vunpack.c.h.b16 %v1843
    %v2168 = vunpack.c.l.b16 %v1844
    %v2169 = vunpack.c.h.b16 %v1844
    %v2170 = vunpack.c.l.b16 %v1845
    %v2171 = vunpack.c.h.b16 %v1845
    %v2172 = vunpack.c.l.b16 %v1846
    %v2173 = vunpack.c.h.b16 %v1846
    %v2174 = vunpack.c.l.b16 %v1847
    %v2175 = vunpack.c.h.b16 %v1847
    %v2176 = vunpack.c.l.b16 %v1848
    %v2177 = vunpack.c.h.b16 %v1848
    %v2178 = vunpack.c.l.b16 %v1849
    %v2179 = vunpack.c.h.b16 %v1849
    %v2180 = vunpack.c.l.b16 %v1850
    %v2181 = vunpack.c.h.b16 %v1850
    %v2182 = vunpack.c.l.b16 %v1851
    %v2183 = vunpack.c.h.b16 %v1851
    %v2184 = vunpack.c.l.b16 %v1852
    %v2185 = vunpack.c.h.b16 %v1852
    %v2186 = vunpack.c.l.b16 %v1853
    %v2187 = vunpack.c.h.b16 %v1853
    %v2188 = vunpack.c.l.b16 %v1854
    %v2189 = vunpack.c.h.b16 %v1854
    %v2190 = vunpack.c.l.b16 %v1855
    %v2191 = vunpack.c.h.b16 %v1855
    %v2192 = vunpack.c.l.b16 %v1856
    %v2193 = vunpack.c.h.b16 %v1856
    %v2194 = vunpack.c.l.b16 %v1857
    %v2195 = vunpack.c.h.b16 %v1857
    %v2196 = vunpack.c.l.b16 %v1858
    %v2197 = vunpack.c.h.b16 %v1858
    %v2198 = vunpack.c.l.b16 %v1859
    %v2199 = vunpack.c.h.b16 %v1859
    %v2200 = vunpack.c.l.b16 %v1860
    %v2201 = vunpack.c.h.b16 %v1860
    %v2202 = vunpack.c.l.b16 %v1861
    %v2203 = vunpack.c.h.b16 %v1861
    %v2204 = vunpack.c.l.b16 %v1862
    %v2205 = vunpack.c.h.b16 %v1862
    %v2206 = vunpack.c.l.b16 %v1863
    %v2207 = vunpack.c.h.b16 %v1863
    %v2208 = vunpack.c.l.b16 %v1864
    %v2209 = vunpack.c.h.b16 %v1864
    %v2210 = vunpack.c.l.b16 %v1865
    %v2211 = vunpack.c.h.b16 %v1865
    %v2212 = vunpack.c.l.b16 %v1866
    %v2213 = vunpack.c.h.b16 %v1866
    %v2214 = vunpack.c.l.b16 %v1867
    %v2215 = vunpack.c.h.b16 %v1867
    %v2216 = vunpack.c.l.b16 %v1868
    %v2217 = vunpack.c.h.b16 %v1868
    %v2218 = vunpack.c.l.b16 %v1869
    %v2219 = vunpack.c.h.b16 %v1869
    %v2220 = vunpack.c.l.b16 %v1870
    %v2221 = vunpack.c.h.b16 %v1870
    %v2222 = vunpack.c.l.b16 %v1871
    %v2223 = vunpack.c.h.b16 %v1871
    %v2224 = vunpack.c.l.b16 %v1872
    %v2225 = vunpack.c.h.b16 %v1872
    %v2226 = vunpack.c.l.b16 %v1873
    %v2227 = vunpack.c.h.b16 %v1873
    %v2228 = vunpack.c.l.b16 %v1874
    %v2229 = vunpack.c.h.b16 %v1874
    %v2230 = vunpack.c.l.b16 %v1875
    %v2231 = vunpack.c.h.b16 %v1875
    %v2232 = vunpack.c.l.b16 %v1876
    %v2233 = vunpack.c.h.b16 %v1876
    %v2234 = vunpack.c.l.b16 %v1877
    %v2235 = vunpack.c.h.b16 %v1877
    %v2236 = vunpack.c.l.b16 %v1878
    %v2237 = vunpack.c.h.b16 %v1878
    %v2238 = vunpack.c.l.b16 %v1879
    %v2239 = vunpack.c.h.b16 %v1879
    %v2240 = vunpack.c.l.b16 %v1880
    %v2241 = vunpack.c.h.b16 %v1880
    %v2242 = vunpack.c.l.b16 %v1881
    %v2243 = vunpack.c.h.b16 %v1881
    %v2244 = vunpack.c.l.b16 %v1882
    %v2245 = vunpack.c.h.b16 %v1882
    %v2246 = vunpack.c.l.b16 %v1883
    %v2247 = vunpack.c.h.b16 %v1883
    %v2248 = vunpack.c.l.b16 %v1884
    %v2249 = vunpack.c.h.b16 %v1884
    %v2250 = vunpack.c.l.b16 %v1885
    %v2251 = vunpack.c.h.b16 %v1885
    %v2252 = vunpack.c.l.b16 %v1886
    %v2253 = vunpack.c.h.b16 %v1886
    %v2254 = vunpack.c.l.b16 %v1887
    %v2255 = vunpack.c.h.b16 %v1887
    %v2256 = vunpack.c.l.b16 %v1888
    %v2257 = vunpack.c.h.b16 %v1888
    %v2258 = vunpack.c.l.b16 %v1889
    %v2259 = vunpack.c.h.b16 %v1889
    %v2260 = vunpack.c.l.b16 %v1890
    %v2261 = vunpack.c.h.b16 %v1890
    %v2262 = vunpack.c.l.b16 %v1891
    %v2263 = vunpack.c.h.b16 %v1891
    %v2264 = vunpack.c.l.b16 %v1892
    %v2265 = vunpack.c.h.b16 %v1892
    %v2266 = vunpack.c.l.b16 %v1893
    %v2267 = vunpack.c.h.b16 %v1893
    %v2268 = vunpack.c.l.b16 %v1894
    %v2269 = vunpack.c.h.b16 %v1894
    %v2270 = vunpack.c.l.b16 %v1895
    %v2271 = vunpack.c.h.b16 %v1895
    %v2272 = vunpack.c.l.b16 %v1896
    %v2273 = vunpack.c.h.b16 %v1896
    %v2274 = vunpack.c.l.b16 %v1897
    %v2275 = vunpack.c.h.b16 %v1897
    %v2276 = vunpack.c.l.b16 %v1898
    %v2277 = vunpack.c.h.b16 %v1898
    %v2278 = vunpack.c.l.b16 %v1899
    %v2279 = vunpack.c.h.b16 %v1899
    %v2280 = vunpack.c.l.b16 %v1900
    %v2281 = vunpack.c.h.b16 %v1900
    %v2282 = vunpack.c.l.b16 %v1901
    %v2283 = vunpack.c.h.b16 %v1901
    %v2284 = vunpack.c.l.b16 %v1902
    %v2285 = vunpack.c.h.b16 %v1902
    %v2286 = vunpack.c.l.b16 %v1903
    %v2287 = vunpack.c.h.b16 %v1903
    %v2288 = vunpack.c.l.b16 %v1904
    %v2289 = vunpack.c.h.b16 %v1904
    %v2290 = vunpack.c.l.b16 %v1905
    %v2291 = vunpack.c.h.b16 %v1905
    %v2292 = vunpack.c.l.b16 %v1906
    %v2293 = vunpack.c.h.b16 %v1906
    %v2294 = vunpack.c.l.b16 %v1907
    %v2295 = vunpack.c.h.b16 %v1907
    %v2296 = vunpack.c.l.b16 %v1908
    %v2297 = vunpack.c.h.b16 %v1908
    %v2298 = vunpack.c.l.b16 %v1909
    %v2299 = vunpack.c.h.b16 %v1909
    %v2300 = vunpack.c.l.b16 %v1910
    %v2301 = vunpack.c.h.b16 %v1910
    %v2302 = vunpack.c.l.b16 %v1911
    %v2303 = vunpack.c.h.b16 %v1911
    %v2304 = vunpack.c.l.b16 %v1912
    %v2305 = vunpack.c.h.b16 %v1912
    %v2306 = vunpack.c.l.b16 %v1913
    %v2307 = vunpack.c.h.b16 %v1913
    %v2308 = vunpack.c.l.b16 %v1914
    %v2309 = vunpack.c.h.b16 %v1914
    %v2310 = vunpack.c.l.b16 %v1915
    %v2311 = vunpack.c.h.b16 %v1915
    %v2312 = vunpack.c.l.b16 %v1916
    %v2313 = vunpack.c.h.b16 %v1916
    %v2314 = vunpack.c.l.b16 %v1917
    %v2315 = vunpack.c.h.b16 %v1917
    %v2316 = vunpack.c.l.b16 %v1918
    %v2317 = vunpack.c.h.b16 %v1918
    %v2318 = vunpack.c.l.b16 %v1919
    %v2319 = vunpack.c.h.b16 %v1919
    %v2320 = vunpack.c.l.b16 %v1920
    %v2321 = vunpack.c.h.b16 %v1920
    %v2322 = vunpack.c.l.b16 %v1921
    %v2323 = vunpack.c.h.b16 %v1921
    %v2324 = vunpack.c.l.b16 %v1922
    %v2325 = vunpack.c.h.b16 %v1922
    %v2326 = vunpack.c.l.b16 %v1923
    %v2327 = vunpack.c.h.b16 %v1923
    %v2328 = vunpack.c.l.b16 %v1924
    %v2329 = vunpack.c.h.b16 %v1924
    %v2330 = vunpack.c.l.b16 %v1925
    %v2331 = vunpack.c.h.b16 %v1925
    %v2332 = vpack.c.b16 %v2080, %v2076
    %v2333 = vpack.c.b16 %v2081, %v2077
    %v2334 = vpack.c.b16 %v2082, %v2078
    %v2335 = vpack.c.b16 %v2083, %v2079
    %v2336 = vpack.c.b16 %v2088, %v2084
    %v2337 = vpack.c.b16 %v2089, %v2085
    %v2338 = vpack.c.b16 %v2090, %v2086
    %v2339 = vpack.c.b16 %v2091, %v2087
    %v2340 = vpack.c.b16 %v2096, %v2092
    %v2341 = vpack.c.b16 %v2097, %v2093
    %v2342 = vpack.c.b16 %v2098, %v2094
    %v2343 = vpack.c.b16 %v2099, %v2095
    %v2344 = vpack.c.b16 %v2104, %v2100
    %v2345 = vpack.c.b16 %v2105, %v2101
    %v2346 = vpack.c.b16 %v2106, %v2102
    %v2347 = vpack.c.b16 %v2107, %v2103
    %v2348 = vpack.c.b16 %v2112, %v2108
    %v2349 = vpack.c.b16 %v2113, %v2109
    %v2350 = vpack.c.b16 %v2114, %v2110
    %v2351 = vpack.c.b16 %v2115, %v2111
    %v2352 = vpack.c.b16 %v2120, %v2116
    %v2353 = vpack.c.b16 %v2121, %v2117
    %v2354 = vpack.c.b16 %v2122, %v2118
    %v2355 = vpack.c.b16 %v2123, %v2119
    %v2356 = vpack.c.b16 %v2128, %v2124
    %v2357 = vpack.c.b16 %v2129, %v2125
    %v2358 = vpack.c.b16 %v2130, %v2126
    %v2359 = vpack.c.b16 %v2131, %v2127
    %v2360 = vpack.c.b16 %v2136, %v2132
    %v2361 = vpack.c.b16 %v2137, %v2133
    %v2362 = vpack.c.b16 %v2138, %v2134
    %v2363 = vpack.c.b16 %v2139, %v2135
    %v2364 = vpack.c.b16 %v2144, %v2140
    %v2365 = vpack.c.b16 %v2145, %v2141
    %v2366 = vpack.c.b16 %v2146, %v2142
    %v2367 = vpack.c.b16 %v2147, %v2143
    %v2368 = vpack.c.b16 %v2152, %v2148
    %v2369 = vpack.c.b16 %v2153, %v2149
    %v2370 = vpack.c.b16 %v2154, %v2150
    %v2371 = vpack.c.b16 %v2155, %v2151
    %v2372 = vpack.c.b16 %v2160, %v2156
    %v2373 = vpack.c.b16 %v2161, %v2157
    %v2374 = vpack.c.b16 %v2162, %v2158
    %v2375 = vpack.c.b16 %v2163, %v2159
    %v2376 = vpack.c.b16 %v2168, %v2164
    %v2377 = vpack.c.b16 %v2169, %v2165
    %v2378 = vpack.c.b16 %v2170, %v2166
    %v2379 = vpack.c.b16 %v2171, %v2167
    %v2380 = vpack.c.b16 %v2176, %v2172
    %v2381 = vpack.c.b16 %v2177, %v2173
    %v2382 = vpack.c.b16 %v2178, %v2174
    %v2383 = vpack.c.b16 %v2179, %v2175
    %v2384 = vpack.c.b16 %v2184, %v2180
    %v2385 = vpack.c.b16 %v2185, %v2181
    %v2386 = vpack.c.b16 %v2186, %v2182
    %v2387 = vpack.c.b16 %v2187, %v2183
    %v2388 = vpack.c.b16 %v2192, %v2188
    %v2389 = vpack.c.b16 %v2193, %v2189
    %v2390 = vpack.c.b16 %v2194, %v2190
    %v2391 = vpack.c.b16 %v2195, %v2191
    %v2392 = vpack.c.b16 %v2200, %v2196
    %v2393 = vpack.c.b16 %v2201, %v2197
    %v2394 = vpack.c.b16 %v2202, %v2198
    %v2395 = vpack.c.b16 %v2203, %v2199
    %v2396 = vpack.c.b16 %v2208, %v2204
    %v2397 = vpack.c.b16 %v2209, %v2205
    %v2398 = vpack.c.b16 %v2210, %v2206
    %v2399 = vpack.c.b16 %v2211, %v2207
    %v2400 = vpack.c.b16 %v2216, %v2212
    %v2401 = vpack.c.b16 %v2217, %v2213
    %v2402 = vpack.c.b16 %v2218, %v2214
    %v2403 = vpack.c.b16 %v2219, %v2215
    %v2404 = vpack.c.b16 %v2224, %v2220
    %v2405 = vpack.c.b16 %v2225, %v2221
    %v2406 = vpack.c.b16 %v2226, %v2222
    %v2407 = vpack.c.b16 %v2227, %v2223
    %v2408 = vpack.c.b16 %v2232, %v2228
    %v2409 = vpack.c.b16 %v2233, %v2229
    %v2410 = vpack.c.b16 %v2234, %v2230
    %v2411 = vpack.c.b16 %v2235, %v2231
    %v2412 = vpack.c.b16 %v2240, %v2236
    %v2413 = vpack.c.b16 %v2241, %v2237
    %v2414 = vpack.c.b16 %v2242, %v2238
    %v2415 = vpack.c.b16 %v2243, %v2239
    %v2416 = vpack.c.b16 %v2248, %v2244
    %v2417 = vpack.c.b16 %v2249, %v2245
    %v2418 = vpack.c.b16 %v2250, %v2246
    %v2419 = vpack.c.b16 %v2251, %v2247
    %v2420 = vpack.c.b16 %v2256, %v2252
    %v2421 = vpack.c.b16 %v2257, %v2253
    %v2422 = vpack.c.b16 %v2258, %v2254
    %v2423 = vpack.c.b16 %v2259, %v2255
    %v2424 = vpack.c.b16 %v2264, %v2260
    %v2425 = vpack.c.b16 %v2265, %v2261
    %v2426 = vpack.c.b16 %v2266, %v2262
    %v2427 = vpack.c.b16 %v2267, %v2263
    %v2428 = vpack.c.b16 %v2272, %v2268
    %v2429 = vpack.c.b16 %v2273, %v2269
    %v2430 = vpack.c.b16 %v2274, %v2270
    %v2431 = vpack.c.b16 %v2275, %v2271
    %v2432 = vpack.c.b16 %v2280, %v2276
    %v2433 = vpack.c.b16 %v2281, %v2277
    %v2434 = vpack.c.b16 %v2282, %v2278
    %v2435 = vpack.c.b16 %v2283, %v2279
    %v2436 = vpack.c.b16 %v2288, %v2284
    %v2437 = vpack.c.b16 %v2289, %v2285
    %v2438 = vpack.c.b16 %v2290, %v2286
    %v2439 = vpack.c.b16 %v2291, %v2287
    %v2440 = vpack.c.b16 %v2296, %v2292
    %v2441 = vpack.c.b16 %v2297, %v2293
    %v2442 = vpack.c.b16 %v2298, %v2294
    %v2443 = vpack.c.b16 %v2299, %v2295
    %v2444 = vpack.c.b16 %v2304, %v2300
    %v2445 = vpack.c.b16 %v2305, %v2301
    %v2446 = vpack.c.b16 %v2306, %v2302
    %v2447 = vpack.c.b16 %v2307, %v2303
    %v2448 = vpack.c.b16 %v2312, %v2308
    %v2449 = vpack.c.b16 %v2313, %v2309
    %v2450 = vpack.c.b16 %v2314, %v2310
    %v2451 = vpack.c.b16 %v2315, %v2311
    %v2452 = vpack.c.b16 %v2320, %v2316
    %v2453 = vpack.c.b16 %v2321, %v2317
    %v2454 = vpack.c.b16 %v2322, %v2318
    %v2455 = vpack.c.b16 %v2323, %v2319
    %v2456 = vpack.c.b16 %v2328, %v2324
    %v2457 = vpack.c.b16 %v2329, %v2325
    %v2458 = vpack.c.b16 %v2330, %v2326
    %v2459 = vpack.c.b16 %v2331, %v2327
    %2588 = vmatprep.subr.bf16.mxu0 %v2333
    %2589 = vmatpush1.bf16.msra.mxu0 %v2332
    %2590 = vmatprep.subr.bf16.mxu0 %v2337
    %2591 = vmatpush1.bf16.msra.mxu0 %v2336
    %2592 = vmatprep.subr.bf16.mxu0 %v2341
    %2593 = vmatpush1.bf16.msra.mxu0 %v2340
    %2594 = vmatprep.subr.bf16.mxu0 %v2345
    %2595 = vmatpush1.bf16.msra.mxu0 %v2344
    %2596 = vmatprep.subr.bf16.mxu0 %v2349
    %2597 = vmatpush1.bf16.msra.mxu0 %v2348
    %2598 = vmatprep.subr.bf16.mxu0 %v2353
    %2599 = vmatpush1.bf16.msra.mxu0 %v2352
    %2600 = vmatprep.subr.bf16.mxu0 %v2357
    %2601 = vmatpush1.bf16.msra.mxu0 %v2356
    %2602 = vmatprep.subr.bf16.mxu0 %v2361
    %2603 = vmatpush1.bf16.msra.mxu0 %v2360
    %2604 = vmatprep.subr.bf16.mxu0 %v2365
    %2605 = vmatpush1.bf16.msra.mxu0 %v2364
    %2606 = vmatprep.subr.bf16.mxu0 %v2369
    %2607 = vmatpush1.bf16.msra.mxu0 %v2368
    %2608 = vmatprep.subr.bf16.mxu0 %v2373
    %2609 = vmatpush1.bf16.msra.mxu0 %v2372
    %2610 = vmatprep.subr.bf16.mxu0 %v2377
    %2611 = vmatpush1.bf16.msra.mxu0 %v2376
    %2612 = vmatprep.subr.bf16.mxu0 %v2381
    %2613 = vmatpush1.bf16.msra.mxu0 %v2380
    %2614 = vmatprep.subr.bf16.mxu0 %v2385
    %2615 = vmatpush1.bf16.msra.mxu0 %v2384
    %2616 = vmatprep.subr.bf16.mxu0 %v2389
    %2617 = vmatpush1.bf16.msra.mxu0 %v2388
    %2618 = vmatprep.subr.bf16.mxu0 %v2393
    %2619 = vmatpush1.bf16.msra.mxu0 %v2392
    %2620 = vmatprep.mubr.bf16.mxu0 %v1795
    %2621 = vmatmul.mubr.bf16.gmra.mrb[0].mxu0 %v1794
    %v2622 = vpop.f32.mrb[0].mxu0
    %v2623 = vadd.f32 %v1931, %v2622
    %v2624 = vpop.f32.mrb[0].mxu0
    %v2625 = vadd.f32 %v1935, %v2624
    %v2626 = vpop.f32.mrb[0].mxu0
    %v2627 = vadd.f32 %v1931, %v2626
    %v2628 = vpop.f32.mrb[0].mxu0
    %v2629 = vadd.f32 %v1935, %v2628
    %2630 = vdwg.mxu0
    %2631 = vmatprep.subr.bf16.mxu0 %v2397
    %2632 = vmatpush1.bf16.msra.mxu0 %v2396
    %2633 = vmatprep.subr.bf16.mxu0 %v2401
    %2634 = vmatpush1.bf16.msra.mxu0 %v2400
    %2635 = vmatprep.subr.bf16.mxu0 %v2405
    %2636 = vmatpush1.bf16.msra.mxu0 %v2404
    %2637 = vmatprep.subr.bf16.mxu0 %v2409
    %2638 = vmatpush1.bf16.msra.mxu0 %v2408
    %2639 = vmatprep.subr.bf16.mxu0 %v2413
    %2640 = vmatpush1.bf16.msra.mxu0 %v2412
    %2641 = vmatprep.subr.bf16.mxu0 %v2417
    %2642 = vmatpush1.bf16.msra.mxu0 %v2416
    %2643 = vmatprep.subr.bf16.mxu0 %v2421
    %2644 = vmatpush1.bf16.msra.mxu0 %v2420
    %2645 = vmatprep.subr.bf16.mxu0 %v2425
    %2646 = vmatpush1.bf16.msra.mxu0 %v2424
    %2647 = vmatprep.subr.bf16.mxu0 %v2429
    %2648 = vmatpush1.bf16.msra.mxu0 %v2428
    %2649 = vmatprep.subr.bf16.mxu0 %v2433
    %2650 = vmatpush1.bf16.msra.mxu0 %v2432
    %2651 = vmatprep.subr.bf16.mxu0 %v2437
    %2652 = vmatpush1.bf16.msra.mxu0 %v2436
    %2653 = vmatprep.subr.bf16.mxu0 %v2441
    %2654 = vmatpush1.bf16.msra.mxu0 %v2440
    %2655 = vmatprep.subr.bf16.mxu0 %v2445
    %2656 = vmatpush1.bf16.msra.mxu0 %v2444
    %2657 = vmatprep.subr.bf16.mxu0 %v2449
    %2658 = vmatpush1.bf16.msra.mxu0 %v2448
    %2659 = vmatprep.subr.bf16.mxu0 %v2453
    %2660 = vmatpush1.bf16.msra.mxu0 %v2452
    %2661 = vmatprep.subr.bf16.mxu0 %v2457
    %2662 = vmatpush1.bf16.msra.mxu0 %v2456
    %2663 = vmatprep.mubr.bf16.mxu0 %v1797
    %2664 = vmatmul.mubr.bf16.gmra.mrb[0].mxu0 %v1796
    %v2665 = vpop.f32.mrb[0].mxu0
    %v2666 = vadd.f32 %v2623, %v2665
    %v2667 = vpop.f32.mrb[0].mxu0
    %v2668 = vadd.f32 %v2625, %v2667
    %v2669 = vpop.f32.mrb[0].mxu0
    %v2670 = vadd.f32 %v2627, %v2669
    %v2671 = vpop.f32.mrb[0].mxu0
    %v2672 = vadd.f32 %v2629, %v2671
    %2673 = vdwg.mxu0
    %2674 = vmatprep.subr.bf16.mxu0 %v2335
    %2675 = vmatpush1.bf16.msra.mxu0 %v2334
    %2676 = vmatprep.subr.bf16.mxu0 %v2339
    %2677 = vmatpush1.bf16.msra.mxu0 %v2338
    %2678 = vmatprep.subr.bf16.mxu0 %v2343
    %2679 = vmatpush1.bf16.msra.mxu0 %v2342
    %2680 = vmatprep.subr.bf16.mxu0 %v2347
    %2681 = vmatpush1.bf16.msra.mxu0 %v2346
    %2682 = vmatprep.subr.bf16.mxu0 %v2351
    %2683 = vmatpush1.bf16.msra.mxu0 %v2350
    %2684 = vmatprep.subr.bf16.mxu0 %v2355
    %2685 = vmatpush1.bf16.msra.mxu0 %v2354
    %2686 = vmatprep.subr.bf16.mxu0 %v2359
    %2687 = vmatpush1.bf16.msra.mxu0 %v2358
    %2688 = vmatprep.subr.bf16.mxu0 %v2363
    %2689 = vmatpush1.bf16.msra.mxu0 %v2362
    %2690 = vmatprep.subr.bf16.mxu0 %v2367
    %2691 = vmatpush1.bf16.msra.mxu0 %v2366
    %2692 = vmatprep.subr.bf16.mxu0 %v2371
    %2693 = vmatpush1.bf16.msra.mxu0 %v2370
    %2694 = vmatprep.subr.bf16.mxu0 %v2375
    %2695 = vmatpush1.bf16.msra.mxu0 %v2374
    %2696 = vmatprep.subr.bf16.mxu0 %v2379
    %2697 = vmatpush1.bf16.msra.mxu0 %v2378
    %2698 = vmatprep.subr.bf16.mxu0 %v2383
    %2699 = vmatpush1.bf16.msra.mxu0 %v2382
    %2700 = vmatprep.subr.bf16.mxu0 %v2387
    %2701 = vmatpush1.bf16.msra.mxu0 %v2386
    %2702 = vmatprep.subr.bf16.mxu0 %v2391
    %2703 = vmatpush1.bf16.msra.mxu0 %v2390
    %2704 = vmatprep.subr.bf16.mxu0 %v2395
    %2705 = vmatpush1.bf16.msra.mxu0 %v2394
    %2706 = vmatprep.mubr.bf16.mxu0 %v1795
    %2707 = vmatmul.mubr.bf16.gmra.mrb[0].mxu0 %v1794
    %v2708 = vpop.f32.mrb[0].mxu0
    %v2709 = vadd.f32 %v1939, %v2708
    %v2710 = vpop.f32.mrb[0].mxu0
    %v2711 = vadd.f32 %v1943, %v2710
    %v2712 = vpop.f32.mrb[0].mxu0
    %v2713 = vadd.f32 %v1939, %v2712
    %v2714 = vpop.f32.mrb[0].mxu0
    %v2715 = vadd.f32 %v1943, %v2714
    %2716 = vdwg.mxu0
    %2717 = vmatprep.subr.bf16.mxu0 %v2399
    %2718 = vmatpush1.bf16.msra.mxu0 %v2398
    %2719 = vmatprep.subr.bf16.mxu0 %v2403
    %2720 = vmatpush1.bf16.msra.mxu0 %v2402
    %2721 = vmatprep.subr.bf16.mxu0 %v2407
    %2722 = vmatpush1.bf16.msra.mxu0 %v2406
    %2723 = vmatprep.subr.bf16.mxu0 %v2411
    %2724 = vmatpush1.bf16.msra.mxu0 %v2410
    %2725 = vmatprep.subr.bf16.mxu0 %v2415
    %2726 = vmatpush1.bf16.msra.mxu0 %v2414
    %2727 = vmatprep.subr.bf16.mxu0 %v2419
    %2728 = vmatpush1.bf16.msra.mxu0 %v2418
    %2729 = vmatprep.subr.bf16.mxu0 %v2423
    %2730 = vmatpush1.bf16.msra.mxu0 %v2422
    %2731 = vmatprep.subr.bf16.mxu0 %v2427
    %2732 = vmatpush1.bf16.msra.mxu0 %v2426
    %2733 = vmatprep.subr.bf16.mxu0 %v2431
    %2734 = vmatpush1.bf16.msra.mxu0 %v2430
    %2735 = vmatprep.subr.bf16.mxu0 %v2435
    %2736 = vmatpush1.bf16.msra.mxu0 %v2434
    %2737 = vmatprep.subr.bf16.mxu0 %v2439
    %2738 = vmatpush1.bf16.msra.mxu0 %v2438
    %2739 = vmatprep.subr.bf16.mxu0 %v2443
    %2740 = vmatpush1.bf16.msra.mxu0 %v2442
    %2741 = vmatprep.subr.bf16.mxu0 %v2447
    %2742 = vmatpush1.bf16.msra.mxu0 %v2446
    %2743 = vmatprep.subr.bf16.mxu0 %v2451
    %2744 = vmatpush1.bf16.msra.mxu0 %v2450
    %2745 = vmatprep.subr.bf16.mxu0 %v2455
    %2746 = vmatpush1.bf16.msra.mxu0 %v2454
    %2747 = vmatprep.subr.bf16.mxu0 %v2459
    %2748 = vmatpush1.bf16.msra.mxu0 %v2458
    %2749 = vmatprep.mubr.bf16.mxu0 %v1797
    %2750 = vmatmul.mubr.bf16.gmra.mrb[0].mxu0 %v1796
    %v2751 = vpop.f32.mrb[0].mxu0
    %v2752 = vadd.f32 %v2709, %v2751
    %v2753 = vpop.f32.mrb[0].mxu0
    %v2754 = vadd.f32 %v2711, %v2753
    %v2755 = vpop.f32.mrb[0].mxu0
    %v2756 = vadd.f32 %v2713, %v2755
    %v2757 = vpop.f32.mrb[0].mxu0
    %v2758 = vadd.f32 %v2715, %v2757
    %2759 = vdwg.mxu0
    %v2760 = vmax.f32 %v2666, 0.0
    %v2761 = vmax.f32 %v2668, 0.0
    %v2762 = vmax.f32 %v2752, 0.0
    %v2763 = vmax.f32 %v2754, 0.0
    %v2764 = vmax.f32 %v2670, 0.0
    %v2765 = vmax.f32 %v2672, 0.0
    %v2766 = vmax.f32 %v2756, 0.0
    %v2767 = vmax.f32 %v2758, 0.0
    %v2768 = vpack.c.bf16 %v2764, %v2760
    %v2769 = vpack.c.bf16 %v2765, %v2761
    %v2770 = vpack.c.bf16 %v2766, %v2762
    %v2771 = vpack.c.bf16 %v2767, %v2763
    %v2772 = vld [vmem:[%s5] sm:$0xf]
    %v2773 = vld [vmem:[%s5 + $0x4] sm:$0xf]
    %v2774 = vld [vmem:[%s5 + $0x8] sm:$0xf]
    %v2775 = vld [vmem:[%s5 + $0xc] sm:$0xf]
    %v2776 = vld [vmem:[%s5 + $0x10] sm:$0xf]
    %v2777 = vld [vmem:[%s5 + $0x14] sm:$0xf]
    %v2778 = vld [vmem:[%s5 + $0x18] sm:$0xf]
    %v2779 = vld [vmem:[%s5 + $0x1c] sm:$0xf]
    %v2780 = vld [vmem:[%s5 + $0x20] sm:$0xf]
    %v2781 = vld [vmem:[%s5 + $0x24] sm:$0xf]
    %v2782 = vld [vmem:[%s5 + $0x28] sm:$0xf]
    %v2783 = vld [vmem:[%s5 + $0x2c] sm:$0xf]
    %v2784 = vld [vmem:[%s5 + $0x30] sm:$0xf]
    %v2785 = vld [vmem:[%s5 + $0x34] sm:$0xf]
    %v2786 = vld [vmem:[%s5 + $0x38] sm:$0xf]
    %v2787 = vld [vmem:[%s5 + $0x3c] sm:$0xf]
    %v2788 = vld [vmem:[%s5 + $0x40] sm:$0xf]
    %v2789 = vld [vmem:[%s5 + $0x44] sm:$0xf]
    %v2790 = vld [vmem:[%s5 + $0x48] sm:$0xf]
    %v2791 = vld [vmem:[%s5 + $0x4c] sm:$0xf]
    %v2792 = vld [vmem:[%s5 + $0x50] sm:$0xf]
    %v2793 = vld [vmem:[%s5 + $0x54] sm:$0xf]
    %v2794 = vld [vmem:[%s5 + $0x58] sm:$0xf]
    %v2795 = vld [vmem:[%s5 + $0x5c] sm:$0xf]
    %v2796 = vld [vmem:[%s5 + $0x60] sm:$0xf]
    %v2797 = vld [vmem:[%s5 + $0x64] sm:$0xf]
    %v2798 = vld [vmem:[%s5 + $0x68] sm:$0xf]
    %v2799 = vld [vmem:[%s5 + $0x6c] sm:$0xf]
    %v2800 = vld [vmem:[%s5 + $0x70] sm:$0xf]
    %v2801 = vld [vmem:[%s5 + $0x74] sm:$0xf]
    %v2802 = vld [vmem:[%s5 + $0x78] sm:$0xf]
    %v2803 = vld [vmem:[%s5 + $0x7c] sm:$0xf]
    %v2804 = vld [vmem:[%s5 + $0x80] sm:$0xf]
    %v2805 = vld [vmem:[%s5 + $0x84] sm:$0xf]
    %v2806 = vld [vmem:[%s5 + $0x88] sm:$0xf]
    %v2807 = vld [vmem:[%s5 + $0x8c] sm:$0xf]
    %v2808 = vld [vmem:[%s5 + $0x90] sm:$0xf]
    %v2809 = vld [vmem:[%s5 + $0x94] sm:$0xf]
    %v2810 = vld [vmem:[%s5 + $0x98] sm:$0xf]
    %v2811 = vld [vmem:[%s5 + $0x9c] sm:$0xf]
    %v2812 = vld [vmem:[%s5 + $0xa0] sm:$0xf]
    %v2813 = vld [vmem:[%s5 + $0xa4] sm:$0xf]
    %v2814 = vld [vmem:[%s5 + $0xa8] sm:$0xf]
    %v2815 = vld [vmem:[%s5 + $0xac] sm:$0xf]
    %v2816 = vld [vmem:[%s5 + $0xb0] sm:$0xf]
    %v2817 = vld [vmem:[%s5 + $0xb4] sm:$0xf]
    %v2818 = vld [vmem:[%s5 + $0xb8] sm:$0xf]
    %v2819 = vld [vmem:[%s5 + $0xbc] sm:$0xf]
    %v2820 = vld [vmem:[%s5 + $0xc0] sm:$0xf]
    %v2821 = vld [vmem:[%s5 + $0xc4] sm:$0xf]
    %v2822 = vld [vmem:[%s5 + $0xc8] sm:$0xf]
    %v2823 = vld [vmem:[%s5 + $0xcc] sm:$0xf]
    %v2824 = vld [vmem:[%s5 + $0xd0] sm:$0xf]
    %v2825 = vld [vmem:[%s5 + $0xd4] sm:$0xf]
    %v2826 = vld [vmem:[%s5 + $0xd8] sm:$0xf]
    %v2827 = vld [vmem:[%s5 + $0xdc] sm:$0xf]
    %v2828 = vld [vmem:[%s5 + $0xe0] sm:$0xf]
    %v2829 = vld [vmem:[%s5 + $0xe4] sm:$0xf]
    %v2830 = vld [vmem:[%s5 + $0xe8] sm:$0xf]
    %v2831 = vld [vmem:[%s5 + $0xec] sm:$0xf]
    %v2832 = vld [vmem:[%s5 + $0xf0] sm:$0xf]
    %v2833 = vld [vmem:[%s5 + $0xf4] sm:$0xf]
    %v2834 = vld [vmem:[%s5 + $0xf8] sm:$0xf]
    %v2835 = vld [vmem:[%s5 + $0xfc] sm:$0xf]
    %v2836 = vld [vmem:[%s6] sm:$0x1]
    %v2838 = vlaneseq
    %v2839 = vshrl.u32 %v2838, 7
    %v2840 = vsub.s32 0, %v2839
    %v2841 = vrot.slane %v2836, %v2840
    %v2907 = vunpack.c.l.b16 %v2772
    %v2908 = vunpack.c.l.b16 %v2773
    %v2909 = vunpack.c.l.b16 %v2774
    %v2910 = vunpack.c.l.b16 %v2775
    %v2911 = vunpack.c.l.b16 %v2776
    %v2912 = vunpack.c.l.b16 %v2777
    %v2913 = vunpack.c.l.b16 %v2778
    %v2914 = vunpack.c.l.b16 %v2779
    %v2915 = vunpack.c.l.b16 %v2780
    %v2916 = vunpack.c.l.b16 %v2781
    %v2917 = vunpack.c.l.b16 %v2782
    %v2918 = vunpack.c.l.b16 %v2783
    %v2919 = vunpack.c.l.b16 %v2784
    %v2920 = vunpack.c.l.b16 %v2785
    %v2921 = vunpack.c.l.b16 %v2786
    %v2922 = vunpack.c.l.b16 %v2787
    %v2923 = vunpack.c.l.b16 %v2788
    %v2924 = vunpack.c.l.b16 %v2789
    %v2925 = vunpack.c.l.b16 %v2790
    %v2926 = vunpack.c.l.b16 %v2791
    %v2927 = vunpack.c.l.b16 %v2792
    %v2928 = vunpack.c.l.b16 %v2793
    %v2929 = vunpack.c.l.b16 %v2794
    %v2930 = vunpack.c.l.b16 %v2795
    %v2931 = vunpack.c.l.b16 %v2796
    %v2932 = vunpack.c.l.b16 %v2797
    %v2933 = vunpack.c.l.b16 %v2798
    %v2934 = vunpack.c.l.b16 %v2799
    %v2935 = vunpack.c.l.b16 %v2800
    %v2936 = vunpack.c.l.b16 %v2801
    %v2937 = vunpack.c.l.b16 %v2802
    %v2938 = vunpack.c.l.b16 %v2803
    %v2939 = vunpack.c.l.b16 %v2804
    %v2940 = vunpack.c.l.b16 %v2805
    %v2941 = vunpack.c.l.b16 %v2806
    %v2942 = vunpack.c.l.b16 %v2807
    %v2943 = vunpack.c.l.b16 %v2808
    %v2944 = vunpack.c.l.b16 %v2809
    %v2945 = vunpack.c.l.b16 %v2810
    %v2946 = vunpack.c.l.b16 %v2811
    %v2947 = vunpack.c.l.b16 %v2812
    %v2948 = vunpack.c.l.b16 %v2813
    %v2949 = vunpack.c.l.b16 %v2814
    %v2950 = vunpack.c.l.b16 %v2815
    %v2951 = vunpack.c.l.b16 %v2816
    %v2952 = vunpack.c.l.b16 %v2817
    %v2953 = vunpack.c.l.b16 %v2818
    %v2954 = vunpack.c.l.b16 %v2819
    %v2955 = vunpack.c.l.b16 %v2820
    %v2956 = vunpack.c.l.b16 %v2821
    %v2957 = vunpack.c.l.b16 %v2822
    %v2958 = vunpack.c.l.b16 %v2823
    %v2959 = vunpack.c.l.b16 %v2824
    %v2960 = vunpack.c.l.b16 %v2825
    %v2961 = vunpack.c.l.b16 %v2826
    %v2962 = vunpack.c.l.b16 %v2827
    %v2963 = vunpack.c.l.b16 %v2828
    %v2964 = vunpack.c.l.b16 %v2829
    %v2965 = vunpack.c.l.b16 %v2830
    %v2966 = vunpack.c.l.b16 %v2831
    %v2967 = vunpack.c.l.b16 %v2832
    %v2968 = vunpack.c.l.b16 %v2833
    %v2969 = vunpack.c.l.b16 %v2834
    %v2970 = vunpack.c.l.b16 %v2835
    %v2971 = vpack.c.b16 %v2908, %v2907
    %v2972 = vpack.c.b16 %v2910, %v2909
    %v2973 = vpack.c.b16 %v2912, %v2911
    %v2974 = vpack.c.b16 %v2914, %v2913
    %v2975 = vpack.c.b16 %v2916, %v2915
    %v2976 = vpack.c.b16 %v2918, %v2917
    %v2977 = vpack.c.b16 %v2920, %v2919
    %v2978 = vpack.c.b16 %v2922, %v2921
    %v2979 = vpack.c.b16 %v2924, %v2923
    %v2980 = vpack.c.b16 %v2926, %v2925
    %v2981 = vpack.c.b16 %v2928, %v2927
    %v2982 = vpack.c.b16 %v2930, %v2929
    %v2983 = vpack.c.b16 %v2932, %v2931
    %v2984 = vpack.c.b16 %v2934, %v2933
    %v2985 = vpack.c.b16 %v2936, %v2935
    %v2986 = vpack.c.b16 %v2938, %v2937
    %v2987 = vpack.c.b16 %v2940, %v2939
    %v2988 = vpack.c.b16 %v2942, %v2941
    %v2989 = vpack.c.b16 %v2944, %v2943
    %v2990 = vpack.c.b16 %v2946, %v2945
    %v2991 = vpack.c.b16 %v2948, %v2947
    %v2992 = vpack.c.b16 %v2950, %v2949
    %v2993 = vpack.c.b16 %v2952, %v2951
    %v2994 = vpack.c.b16 %v2954, %v2953
    %v2995 = vpack.c.b16 %v2956, %v2955
    %v2996 = vpack.c.b16 %v2958, %v2957
    %v2997 = vpack.c.b16 %v2960, %v2959
    %v2998 = vpack.c.b16 %v2962, %v2961
    %v2999 = vpack.c.b16 %v2964, %v2963
    %v3000 = vpack.c.b16 %v2966, %v2965
    %v3001 = vpack.c.b16 %v2968, %v2967
    %v3002 = vpack.c.b16 %v2970, %v2969
    %3035 = vmatprep.subr.bf16.mxu0 0
    %3036 = vmatpush1.bf16.msra.mxu0 %v2971
    %3037 = vmatprep.subr.bf16.mxu0 0
    %3038 = vmatpush1.bf16.msra.mxu0 %v2972
    %3039 = vmatprep.subr.bf16.mxu0 0
    %3040 = vmatpush1.bf16.msra.mxu0 %v2973
    %3041 = vmatprep.subr.bf16.mxu0 0
    %3042 = vmatpush1.bf16.msra.mxu0 %v2974
    %3043 = vmatprep.subr.bf16.mxu0 0
    %3044 = vmatpush1.bf16.msra.mxu0 %v2975
    %3045 = vmatprep.subr.bf16.mxu0 0
    %3046 = vmatpush1.bf16.msra.mxu0 %v2976
    %3047 = vmatprep.subr.bf16.mxu0 0
    %3048 = vmatpush1.bf16.msra.mxu0 %v2977
    %3049 = vmatprep.subr.bf16.mxu0 0
    %3050 = vmatpush1.bf16.msra.mxu0 %v2978
    %3051 = vmatprep.subr.bf16.mxu0 0
    %3052 = vmatpush1.bf16.msra.mxu0 %v2979
    %3053 = vmatprep.subr.bf16.mxu0 0
    %3054 = vmatpush1.bf16.msra.mxu0 %v2980
    %3055 = vmatprep.subr.bf16.mxu0 0
    %3056 = vmatpush1.bf16.msra.mxu0 %v2981
    %3057 = vmatprep.subr.bf16.mxu0 0
    %3058 = vmatpush1.bf16.msra.mxu0 %v2982
    %3059 = vmatprep.subr.bf16.mxu0 0
    %3060 = vmatpush1.bf16.msra.mxu0 %v2983
    %3061 = vmatprep.subr.bf16.mxu0 0
    %3062 = vmatpush1.bf16.msra.mxu0 %v2984
    %3063 = vmatprep.subr.bf16.mxu0 0
    %3064 = vmatpush1.bf16.msra.mxu0 %v2985
    %3065 = vmatprep.subr.bf16.mxu0 0
    %3066 = vmatpush1.bf16.msra.mxu0 %v2986
    %3067 = vmatprep.mubr.bf16.mxu0 %v2769
    %3068 = vmatmul.mubr.bf16.gmra.mrb[0].mxu0 %v2768
    %v3069 = vpop.f32.mrb[0].mxu0
    %v3070 = vadd.f32 %v2841, %v3069
    %v3071 = vpop.f32.mrb[0].mxu0
    %v3072 = vpop.f32.mrb[0].mxu0
    %v3073 = vadd.f32 %v2841, %v3072
    %v3074 = vpop.f32.mrb[0].mxu0
    %3075 = vdwg.mxu0
    %3076 = vmatprep.subr.bf16.mxu0 0
    %3077 = vmatpush1.bf16.msra.mxu0 %v2987
    %3078 = vmatprep.subr.bf16.mxu0 0
    %3079 = vmatpush1.bf16.msra.mxu0 %v2988
    %3080 = vmatprep.subr.bf16.mxu0 0
    %3081 = vmatpush1.bf16.msra.mxu0 %v2989
    %3082 = vmatprep.subr.bf16.mxu0 0
    %3083 = vmatpush1.bf16.msra.mxu0 %v2990
    %3084 = vmatprep.subr.bf16.mxu0 0
    %3085 = vmatpush1.bf16.msra.mxu0 %v2991
    %3086 = vmatprep.subr.bf16.mxu0 0
    %3087 = vmatpush1.bf16.msra.mxu0 %v2992
    %3088 = vmatprep.subr.bf16.mxu0 0
    %3089 = vmatpush1.bf16.msra.mxu0 %v2993
    %3090 = vmatprep.subr.bf16.mxu0 0
    %3091 = vmatpush1.bf16.msra.mxu0 %v2994
    %3092 = vmatprep.subr.bf16.mxu0 0
    %3093 = vmatpush1.bf16.msra.mxu0 %v2995
    %3094 = vmatprep.subr.bf16.mxu0 0
    %3095 = vmatpush1.bf16.msra.mxu0 %v2996
    %3096 = vmatprep.subr.bf16.mxu0 0
    %3097 = vmatpush1.bf16.msra.mxu0 %v2997
    %3098 = vmatprep.subr.bf16.mxu0 0
    %3099 = vmatpush1.bf16.msra.mxu0 %v2998
    %3100 = vmatprep.subr.bf16.mxu0 0
    %3101 = vmatpush1.bf16.msra.mxu0 %v2999
    %3102 = vmatprep.subr.bf16.mxu0 0
    %3103 = vmatpush1.bf16.msra.mxu0 %v3000
    %3104 = vmatprep.subr.bf16.mxu0 0
    %3105 = vmatpush1.bf16.msra.mxu0 %v3001
    %3106 = vmatprep.subr.bf16.mxu0 0
    %3107 = vmatpush1.bf16.msra.mxu0 %v3002
    %3108 = vmatprep.mubr.bf16.mxu0 %v2771
    %3109 = vmatmul.mubr.bf16.gmra.mrb[0].mxu0 %v2770
    %v3110 = vpop.f32.mrb[0].mxu0
    %v3111 = vadd.f32 %v3070, %v3110
    %v3112 = vpop.f32.mrb[0].mxu0
    %v3113 = vpop.f32.mrb[0].mxu0
    %v3114 = vadd.f32 %v3073, %v3113
    %v3115 = vpop.f32.mrb[0].mxu0
    %3116 = vdwg.mxu0
    %3117 = vst [vmem:[%s7] sm:$0xff] %v3111
    %3118 = vst [vmem:[%s7 + $0x8] sm:$0xff] %v3114
    // Predicated region
    $region38: #{neural_network_forward.1} parent=1 // pred_check
      _
    $region39: #{neural_network_forward.1} parent=1 // pred_check_branch
      %3120 = sbr.rel (0) target = $region41
    $region40: #{neural_network_forward.1} parent=1 // pred_region
      _
    $region41: #{neural_network_forward.1} parent=1 // pred_fallthru
      _
    // Predicated region
    $region42: #{neural_network_forward.1} parent=1 // pred_check
      _
    $region43: #{neural_network_forward.1} parent=1 // pred_check_branch
      %3122 = sbr.rel (0) target = $region45
    $region44: #{neural_network_forward.1} parent=1 // pred_region
      _
    $region45: #{neural_network_forward.1} parent=1 // pred_fallthru
      _
    %3123 = vsyncpa [#allocation3], 1
    %3124 = vsyncpa [#allocation5], 1

</llo_original>
